<compile_context>
chip_gen: v5e
topology: v5e:2x2
jax: 0.10.0
libtpu: 0.0.40
codegen_flags: <defaults>
</compile_context>

<pallas_src>
import functools
import math
from typing import NamedTuple

import jax
import jax.numpy as jnp
from jax import lax
from jax.experimental import pallas as pl
from jax.experimental.pallas import tpu as pltpu


_NEG = -1e30
_LOG_EPS = math.log(1e-8)
_TILE_N_CANDIDATES = (2048, 1024, 512, 256, 128)


def _round_up(x, m):
  return ((x + m - 1) // m) * m


class PreparedBank(NamedTuple):
  feat_t: jax.Array     # (F, N_pad) lane-dense, matmul dtype (bf16)
  cam: jax.Array        # (1, N_pad) int32; pad columns carry sentinel id C
  counts: jax.Array     # (1, C) float32 per-camera counts over REAL columns
  n: int                # real (unpadded) number of memory slots
  num_cameras: int


def prepare_memory_bank(features, cam_mem, num_cameras, *,
                        feat_dtype=jnp.bfloat16, pad_multiple=None):
  """One-time bank preparation (hoist this out of the per-step forward)."""
  features = jnp.asarray(features, jnp.float32)
  cam_mem = jnp.asarray(cam_mem, jnp.int32)
  n, _ = features.shape
  if pad_multiple is None:
    pad_multiple = 128 if n <= 4096 else 2048
  n_pad = _round_up(max(n, 128), pad_multiple)
  feat_t = features.T.astype(feat_dtype)
  if n_pad > n:
    feat_t = jnp.pad(feat_t, ((0, 0), (0, n_pad - n)))
    cam = jnp.concatenate(
        [cam_mem, jnp.full((n_pad - n,), num_cameras, jnp.int32)]
    ).reshape(1, n_pad)
  else:
    cam = cam_mem.reshape(1, n_pad)
  counts = jnp.sum(
      (cam_mem.reshape(1, n) ==
       jnp.arange(num_cameras, dtype=jnp.int32).reshape(num_cameras, 1)
       ).astype(jnp.float32), axis=1).reshape(1, num_cameras)
  return PreparedBank(feat_t, cam, counts, int(n), int(num_cameras))


def _memory_wise_kernel(
    # inputs
    x_ref, feat_ref, idx_ref, camrow_ref, caminst_ref, cammem_ref, cnt_ref,
    # outputs
    out_ref,
    # scratch
    xn_ref, sim_ref, cammax_ref, segexp_ref, rowmax_ref, simidx_ref,
    thr_ref, mlb_ref, thri_ref, mlbi_ref, ins_ref,
    acc_nb_ref, acc_ls_ref, acc_ws_ref, acc_nbi_ref, acc_lsi_ref,
    *, temp, neighbor_eps, thresh, total_n):
  p = pl.program_id(1)            # 0 = streaming pass, 1 = loss pass
  k = pl.program_id(2)            # memory-bank tile index
  nk = pl.num_programs(2)

  TB = x_ref.shape[0]
  TN = cammem_ref.shape[1]
  C = cnt_ref.shape[1]
  N = total_n                     # real (unpadded) bank size
  out_cols = out_ref.shape[1]
  inv_temp = 1.0 / temp

  cam_t = cammem_ref[...]                                   # (1, TN) int32
  idx = idx_ref[...]                                        # (TB, 1) int32
  camrow = camrow_ref[...]                                  # (TB, 1) int32
  col_ids = k * TN + lax.broadcasted_iota(jnp.int32, (1, TN), 1)
  valid = col_ids < N                                       # (1, TN) pad mask
  inst = col_ids == idx                                     # (TB, TN) bool
  notinst = jnp.logical_not(inst)
  # one-hot over cameras for this tile (pads match no camera)
  oh_ct = (lax.broadcasted_iota(jnp.int32, (C, TN), 0) == cam_t
           ).astype(jnp.float32)                            # (C, TN)
  inter_m = jnp.logical_and(cam_t != camrow, valid)         # (TB, TN) bool

  # -------------------- init (first step of each batch block) --------------
  @pl.when((p == 0) & (k == 0))
  def _init():
    x = x_ref[...]
    nrm = jnp.sqrt(jnp.sum(x * x, axis=1, keepdims=True))
    xn_ref[...] = (x / jnp.maximum(nrm, 1e-12)).astype(xn_ref.dtype)
    cammax_ref[...] = jnp.full_like(cammax_ref, _NEG)
    segexp_ref[...] = jnp.zeros_like(segexp_ref)
    rowmax_ref[...] = jnp.full_like(rowmax_ref, _NEG)
    simidx_ref[...] = jnp.zeros_like(simidx_ref)
    acc_nb_ref[...] = jnp.zeros_like(acc_nb_ref)
    acc_ls_ref[...] = jnp.zeros_like(acc_ls_ref)
    acc_ws_ref[...] = jnp.zeros_like(acc_ws_ref)
    acc_nbi_ref[...] = jnp.zeros_like(acc_nbi_ref)
    acc_lsi_ref[...] = jnp.zeros_like(acc_lsi_ref)

  # -------------------- pass 0: stream the bank, running statistics --------
  @pl.when(p == 0)
  def _pass0():
    w = feat_ref[...]                                       # (F, TN) bf16
    sim_t = jnp.dot(xn_ref[...], w,
                    preferred_element_type=jnp.float32)     # (TB, TN) MXU
    sim_ref[k] = sim_t                                      # cache in VMEM
    sim_exp_t = sim_t * inv_temp

    # per-camera running max of sim (instance column excluded, pads excluded)
    sim_noinst = jnp.where(notinst, sim_t, _NEG)
    tile_max = []
    for c in range(C):                                      # static unroll
      in_c = cam_t == c
      tile_max.append(
          jnp.max(jnp.where(in_c, sim_noinst, _NEG), axis=1, keepdims=True))
    cammax_ref[...] = jnp.maximum(cammax_ref[...],
                                  jnp.concatenate(tile_max, axis=1))

    # similarity of each row with its own memory slot
    simidx_ref[...] += jnp.sum(jnp.where(inst, sim_t, 0.0),
                               axis=1, keepdims=True)

    # online shifted-exp sums shared by EVERY softmax branch (one exp / elem)
    g_old = rowmax_ref[...]
    g_new = jnp.maximum(g_old, jnp.max(sim_exp_t, axis=1, keepdims=True))
    rescale = jnp.exp(g_old - g_new)                        # (TB, 1)
    e_t = jnp.exp(sim_exp_t - g_new)                        # (TB, TN) EUP
    seg = lax.dot_general(e_t, oh_ct, (((1,), (1,)), ((), ())),
                          preferred_element_type=jnp.float32)   # (TB, C) MXU
    segexp_ref[...] = segexp_ref[...] * rescale + seg
    rowmax_ref[...] = g_new

  # -------------------- finalize per-row branch constants ------------------
  @pl.when((p == 1) & (k == 0))
  def _finalize():
    cnt = cnt_ref[...]                                      # (1, C) float
    cam_ids = lax.broadcasted_iota(jnp.int32, (TB, C), 1)
    row_oh = (cam_ids == camrow).astype(jnp.float32)        # (TB, C)
    inst_oh = cam_ids == caminst_ref[...]                   # (TB, C) bool
    mprime = cammax_ref[...]                                # per-cam max (no inst)
    sidx = simidx_ref[...]                                  # (TB, 1)
    g = rowmax_ref[...]                                     # (TB, 1)
    S = segexp_ref[...]                                     # (TB, C)
    # inter exp sum derived from the per-camera segment sums (pads excluded)
    Sint = (jnp.sum(S, axis=1, keepdims=True)
            - jnp.sum(S * row_oh, axis=1, keepdims=True))   # (TB, 1)

    # per-camera branches (the intra branch is the row's own camera)
    M = jnp.maximum(mprime, jnp.where(inst_oh, sidx, _NEG))     # incl. instance
    floor_ok = jnp.logical_or(cnt < N, inst_oh)   # some masked column exists
    thr_ref[...] = jnp.where(floor_ok, jnp.maximum(mprime, -1.0),
                             mprime) * neighbor_eps             # nearest * eps
    mx = jnp.where(cnt < N, jnp.maximum(M * inv_temp, 0.0), M * inv_temp)
    denom = jnp.exp(g - mx) * S + (N - cnt) * jnp.exp(-mx)
    mlb = mx + jnp.log(denom)                               # max + log(denom)
    mlb_ref[...] = mlb

    # inter branch
    cnt_row = jnp.sum(row_oh * cnt, axis=1, keepdims=True)
    m_int = jnp.max(jnp.where(row_oh > 0.5, _NEG, M), axis=1, keepdims=True)
    thri_ref[...] = jnp.where(cnt_row > 0, jnp.maximum(m_int, -1.0),
                              m_int) * neighbor_eps
    mx_i = jnp.where(cnt_row > 0, jnp.maximum(m_int * inv_temp, 0.0),
                     m_int * inv_temp)
    denom_i = jnp.exp(g - mx_i) * Sint + cnt_row * jnp.exp(-mx_i)
    mlbi_ref[...] = mx_i + jnp.log(denom_i)

    # instance loss: -log softmax score of the row's own slot (intra branch)
    mlb_row = jnp.sum(mlb * row_oh, axis=1, keepdims=True)
    same_cam = caminst_ref[...] == camrow
    val = jnp.where(same_cam, sidx * inv_temp, 0.0)
    ins_ref[...] = -jnp.maximum(val - mlb_row, _LOG_EPS)

  # -------------------- pass 1: neighbor masks + loss sums (VMEM only) -----
  @pl.when(p == 1)
  def _pass1():
    sim_t = sim_ref[k]                                      # (TB, TN)
    sim_exp_t = sim_t * inv_temp
    # broadcast per-(row, camera) constants onto the tile via the MXU
    thr_at = jnp.dot(thr_ref[...], oh_ct, preferred_element_type=jnp.float32)
    mlb_at = jnp.dot(mlb_ref[...], oh_ct, preferred_element_type=jnp.float32)

    sim_m = jnp.where(notinst, sim_t, -1.0)
    nb = (sim_m > thr_at).astype(jnp.float32)               # neighbor mask
    ls = jnp.maximum(sim_exp_t - mlb_at, _LOG_EPS)          # clamped log-score

    dims = (((1,), (1,)), ((), ()))
    acc_nb_ref[...] += lax.dot_general(nb, oh_ct, dims,
                                       preferred_element_type=jnp.float32)
    acc_ws_ref[...] += lax.dot_general(sim_t * nb, oh_ct, dims,
                                       preferred_element_type=jnp.float32)
    acc_ls_ref[...] += lax.dot_general(ls * nb, oh_ct, dims,
                                       preferred_element_type=jnp.float32)

    inter_f = inter_m.astype(jnp.float32)
    sim_mi = jnp.where(inter_m, sim_t, -1.0)
    nbi = (sim_mi > thri_ref[...]).astype(jnp.float32)
    lsi = jnp.maximum(sim_exp_t * inter_f - mlbi_ref[...], _LOG_EPS)
    acc_nbi_ref[...] += jnp.sum(nbi, axis=1, keepdims=True)
    acc_lsi_ref[...] += jnp.sum(lsi * nbi, axis=1, keepdims=True)

  # -------------------- emit per-row losses on the very last step ----------
  @pl.when((p == 1) & (k == nk - 1))
  def _emit():
    cam_ids = lax.broadcasted_iota(jnp.int32, (TB, C), 1)
    row_oh = (cam_ids == camrow).astype(jnp.float32)
    num_nb = acc_nb_ref[...] + 1.0
    loss_c = -acc_ls_ref[...] / num_nb                      # per-camera losses
    intra = jnp.sum(loss_c * row_oh, axis=1, keepdims=True)
    if thresh > 0:
      w = (acc_ws_ref[...] / num_nb > thresh).astype(jnp.float32)
      cam_losses = loss_c * w
    else:
      cam_losses = loss_c
    inter = -acc_lsi_ref[...] / (acc_nbi_ref[...] + 1.0)
    pieces = [ins_ref[...], intra, inter, cam_losses]
    pad = out_cols - (3 + C)
    if pad > 0:
      pieces.append(jnp.zeros((TB, pad), jnp.float32))
    out_ref[...] = jnp.concatenate(pieces, axis=1)


def _vmem_budget():
  """Generation-aware usable VMEM (v5e/v6e: 128 MiB, v7x: 64 MiB per core)."""
  cap = None
  try:
    cap = int(getattr(pltpu.get_tpu_info(), "vmem_capacity_bytes", 0)) or None
  except Exception:
    cap = None
  if cap is None:
    cap = 64 * 1024 * 1024        # conservative fallback (v7x per-core)
  return int(cap * 0.85)


def memory_wise_v1_forward(inputs, indexes, cameras, bank, cam_mem=None, *,
                           temp=0.05, neighbor_eps=0.9, thresh=0.6,
                           num_cameras=3, tile_n=None, tile_b=None,
                           feat_dtype=jnp.bfloat16, vmem_limit_bytes=None):
  """Pallas implementation of Memory_wise_v1.forward (returns the 4 losses).

  `bank` is either a PreparedBank (preferred: prepare once per training run,
  saving a full bank HBM round trip per call) or the raw (N, F) features array
  (then `cam_mem` must be given and preparation happens per call).
  Assumes every camera id lies in [0, num_cameras).
  """
  if not isinstance(bank, PreparedBank):
    bank = prepare_memory_bank(bank, cam_mem, num_cameras,
                               feat_dtype=feat_dtype)

  inputs = jnp.asarray(inputs, jnp.float32)
  B, Fdim = inputs.shape
  N = bank.n
  N_pad = bank.feat_t.shape[1]
  C = bank.num_cameras
  feat_bytes = jnp.dtype(bank.feat_t.dtype).itemsize
  out_cols = max(128, _round_up(3 + C, 128))        # lane-dense output slab

  budget = int(vmem_limit_bytes) if vmem_limit_bytes else _vmem_budget()

  # --- tile_n: biggest candidate whose double-buffered bank tile fits -------
  if (tile_n is None or N_pad % tile_n != 0
      or (tile_n % 128 != 0 and tile_n != N_pad)):
    tile_n = N_pad
    for cand in _TILE_N_CANDIDATES:
      if (cand <= N_pad and N_pad % cand == 0
          and 2 * Fdim * cand * feat_bytes <= budget // 3):
        tile_n = cand
        break
  nt = N_pad // tile_n

  # --- tile_b: shrink only if the resident sim cache would overflow VMEM ----
  def _vmem_use(tb):
    return (2 * Fdim * tile_n * feat_bytes         # double-buffered bank tiles
            + 2 * tb * Fdim * 4                    # double-buffered x blocks
            + tb * Fdim * feat_bytes               # normalized-input scratch
            + tb * N_pad * 4                       # resident sim cache
            + 2 * tb * out_cols * 4                # output block
            + tb * (6 * C + 8) * 4                 # small per-row scratches
            + (1 << 20))

  if tile_b is None:
    tb = _round_up(B, 8)
    while tb > 8 and _vmem_use(tb) > budget:
      tb = max(8, _round_up(tb // 2, 8))
    tile_b = tb
  else:
    tile_b = max(8, _round_up(int(tile_b), 8))
  B_pad = _round_up(B, tile_b)

  # --- pad the batch (pad rows are sliced off before the means) -------------
  indexes = jnp.asarray(indexes, jnp.int32)
  cameras = jnp.asarray(cameras, jnp.int32)
  if B_pad > B:
    inputs = jnp.pad(inputs, ((0, B_pad - B), (0, 0)))
    indexes = jnp.pad(indexes, (0, B_pad - B))
    cameras = jnp.pad(cameras, (0, B_pad - B))
  idx2 = indexes.reshape(B_pad, 1)
  camrow2 = cameras.reshape(B_pad, 1)
  caminst2 = bank.cam[0, indexes].reshape(B_pad, 1)

  kernel = functools.partial(
      _memory_wise_kernel, temp=float(temp), neighbor_eps=float(neighbor_eps),
      thresh=float(thresh), total_n=N)

  grid = (B_pad // tile_b, 2, nt)

  out = pl.pallas_call(
      kernel,
      out_shape=jax.ShapeDtypeStruct((B_pad, out_cols), jnp.float32),
      grid_spec=pltpu.PrefetchScalarGridSpec(
          num_scalar_prefetch=0,
          grid=grid,
          in_specs=[
              pl.BlockSpec((tile_b, Fdim), lambda b, p, k: (b, 0)),
              # bank tiles stream only in pass 0; during pass 1 the block index
              # is pinned to the last pass-0 tile so no redundant DMA is issued.
              pl.BlockSpec((Fdim, tile_n),
                           lambda b, p, k: (0, k * (1 - p) + (nt - 1) * p)),
              pl.BlockSpec((tile_b, 1), lambda b, p, k: (b, 0)),
              pl.BlockSpec((tile_b, 1), lambda b, p, k: (b, 0)),
              pl.BlockSpec((tile_b, 1), lambda b, p, k: (b, 0)),
              pl.BlockSpec((1, tile_n), lambda b, p, k: (0, k)),
              pl.BlockSpec((1, C), lambda b, p, k: (0, 0)),
          ],
          out_specs=pl.BlockSpec((tile_b, out_cols), lambda b, p, k: (b, 0)),
          scratch_shapes=[
              pltpu.VMEM((tile_b, Fdim), bank.feat_t.dtype),  # normalized inputs
              pltpu.VMEM((nt, tile_b, tile_n), jnp.float32),  # cached sim tiles
              pltpu.VMEM((tile_b, C), jnp.float32),           # per-cam max (no inst)
              pltpu.VMEM((tile_b, C), jnp.float32),           # per-cam exp segment sums
              pltpu.VMEM((tile_b, 1), jnp.float32),           # running row max
              pltpu.VMEM((tile_b, 1), jnp.float32),           # sim at own slot
              pltpu.VMEM((tile_b, C), jnp.float32),           # thresholds per cam
              pltpu.VMEM((tile_b, C), jnp.float32),           # max+log(denom) per cam
              pltpu.VMEM((tile_b, 1), jnp.float32),           # inter threshold
              pltpu.VMEM((tile_b, 1), jnp.float32),           # inter max+log(denom)
              pltpu.VMEM((tile_b, 1), jnp.float32),           # instance loss
              pltpu.VMEM((tile_b, C), jnp.float32),           # acc neighbor counts
              pltpu.VMEM((tile_b, C), jnp.float32),           # acc log-score sums
              pltpu.VMEM((tile_b, C), jnp.float32),           # acc weight sums
              pltpu.VMEM((tile_b, 1), jnp.float32),           # acc inter neighbors
              pltpu.VMEM((tile_b, 1), jnp.float32),           # acc inter log-scores
          ],
      ),
      compiler_params=pltpu.CompilerParams(
          dimension_semantics=("parallel", "arbitrary", "arbitrary"),
          vmem_limit_bytes=int(budget),
      ),
  )(inputs, bank.feat_t, idx2, camrow2, caminst2, bank.cam, bank.counts)

  ins_loss = out[:B, 0]
  intra_loss = out[:B, 1]
  inter_loss = out[:B, 2]
  cam_losses = out[:B, 3:3 + C]                             # (B, num_cameras)

  intrawise_total = jnp.sum(jnp.mean(cam_losses, axis=0))
  return (jnp.mean(ins_loss), jnp.mean(intra_loss),
          jnp.mean(inter_loss) * 0.6, intrawise_total * 0.6)


def memory_wise_v1_reference(inputs, indexes, cameras, features, cam_mem, *,
                             temp=0.05, neighbor_eps=0.9, thresh=0.6,
                             num_cameras=3, matmul_dtype=None):
  """Straightforward JAX translation of the PyTorch forward (for verification)."""
  inputs = jnp.asarray(inputs, jnp.float32)
  features = jnp.asarray(features, jnp.float32)
  x = inputs / jnp.maximum(jnp.linalg.norm(inputs, axis=1, keepdims=True), 1e-12)
  feats = features
  if matmul_dtype is not None:
    x = x.astype(matmul_dtype).astype(jnp.float32)
    feats = feats.astype(matmul_dtype).astype(jnp.float32)
  sim = jnp.dot(x, feats.T, precision=jax.lax.Precision.HIGHEST)
  sim_exp = sim / temp
  B, N = sim.shape
  cols = jnp.arange(N)
  mask_instance = (cols[None, :] == indexes[:, None]).astype(jnp.float32)
  mask_intra = (cam_mem[None, :] == cameras[:, None]).astype(jnp.float32)
  mask_inter = 1.0 - mask_intra

  def branch(mask, exclude_instance):
    m = mask * (1.0 - mask_instance) if exclude_instance else mask
    sim_m = (sim + 1.0) * m - 1.0
    nearest = jnp.max(sim_m, axis=1, keepdims=True)
    nb = (sim_m > nearest * neighbor_eps).astype(jnp.float32)
    num_nb = jnp.sum(nb, axis=1) + 1.0
    score = jnp.maximum(jax.nn.softmax(sim_exp * mask, axis=1), 1e-8)
    log_s = jnp.log(score)
    loss = -jnp.sum(log_s * nb, axis=1) / num_nb
    return loss, log_s, nb, num_nb

  intra_loss, log_s_intra, _, _ = branch(mask_intra, True)
  ins_loss = -jnp.sum(log_s_intra * mask_instance, axis=1)
  inter_loss, _, _, _ = branch(mask_inter, False)

  intrawise_total = 0.0
  for c in range(num_cameras):
    mask_c = (cam_mem[None, :] == c).astype(jnp.float32)
    loss_c, _, nb_c, num_c = branch(mask_c, True)
    if thresh > 0:
      w = jnp.sum(sim * nb_c, axis=1) / num_c
      loss_c = loss_c * (w > thresh).astype(jnp.float32)
    intrawise_total = intrawise_total + jnp.mean(loss_c)

  return (jnp.mean(ins_loss), jnp.mean(intra_loss),
          jnp.mean(inter_loss) * 0.6, intrawise_total * 0.6)


if __name__ == "__main__":
  B, Fdim, N, C = 16, 32, 256, 3

  key = jax.random.PRNGKey(0)
  k_in, k_feat, k_idx = jax.random.split(key, 3)

  features = jax.random.normal(k_feat, (N, Fdim), dtype=jnp.float32)
  features = features / jnp.linalg.norm(features, axis=1, keepdims=True)
  cam_mem = jnp.arange(N, dtype=jnp.int32) % C

  inputs = jax.random.normal(k_in, (B, Fdim), dtype=jnp.float32)
  indexes = jax.random.permutation(k_idx, N)[:B].astype(jnp.int32)
  cameras = cam_mem[indexes]

  # Prepare the bank ONCE (hoisted transpose + bf16 cast + padding).
  bank = prepare_memory_bank(features, cam_mem, num_cameras=C)

  losses = memory_wise_v1_forward(
      inputs, indexes, cameras, bank,
      temp=0.05, neighbor_eps=0.9, thresh=0.6,
      tile_n=128, tile_b=8)                       # exercise the (b, pass, n) grid
  losses = jax.block_until_ready(losses)

  ref = memory_wise_v1_reference(
      inputs, indexes, cameras, features, cam_mem,
      temp=0.05, neighbor_eps=0.9, thresh=0.6, num_cameras=C,
      matmul_dtype=jnp.bfloat16)                  # same bf16-rounded operands
  ref = jax.block_until_ready(ref)

  for got, want in zip(losses, ref):
    if not jnp.allclose(got, want, rtol=5e-2, atol=5e-2):
      raise AssertionError(f"mismatch: kernel={got} reference={want}")

  # Also exercise the auto-tiling / convenience (raw features) path once.
  losses2 = memory_wise_v1_forward(
      inputs, indexes, cameras, features, cam_mem,
      temp=0.05, neighbor_eps=0.9, thresh=0.6, num_cameras=C)
  jax.block_until_ready(losses2)
  for got, want in zip(losses2, ref):
    if not jnp.allclose(got, want, rtol=5e-2, atol=5e-2):
      raise AssertionError(f"auto-tile mismatch: kernel={got} reference={want}")

  print("KERNEL_OK")
</pallas_src>

<mosaic_0001>
module attributes {stable_mosaic.version = 11 : i64} {
  func.func @_memory_wise_kernel(%arg0: i32, %arg1: i32, %arg2: i32, %arg3: memref<8x32xf32, #tpu.memory_space<vmem>>, %arg4: memref<32x128xbf16, #tpu.memory_space<vmem>>, %arg5: memref<8x1xi32, #tpu.memory_space<vmem>>, %arg6: memref<8x1xi32, #tpu.memory_space<vmem>>, %arg7: memref<8x1xi32, #tpu.memory_space<vmem>>, %arg8: memref<1x128xi32, #tpu.memory_space<vmem>>, %arg9: memref<1x3xf32, #tpu.memory_space<vmem>>, %arg10: memref<8x128xf32, #tpu.memory_space<vmem>>, %arg11: memref<8x32xbf16, #tpu.memory_space<vmem>>, %arg12: memref<2x8x128xf32, #tpu.memory_space<vmem>>, %arg13: memref<8x3xf32, #tpu.memory_space<vmem>>, %arg14: memref<8x3xf32, #tpu.memory_space<vmem>>, %arg15: memref<8x1xf32, #tpu.memory_space<vmem>>, %arg16: memref<8x1xf32, #tpu.memory_space<vmem>>, %arg17: memref<8x3xf32, #tpu.memory_space<vmem>>, %arg18: memref<8x3xf32, #tpu.memory_space<vmem>>, %arg19: memref<8x1xf32, #tpu.memory_space<vmem>>, %arg20: memref<8x1xf32, #tpu.memory_space<vmem>>, %arg21: memref<8x1xf32, #tpu.memory_space<vmem>>, %arg22: memref<8x3xf32, #tpu.memory_space<vmem>>, %arg23: memref<8x3xf32, #tpu.memory_space<vmem>>, %arg24: memref<8x3xf32, #tpu.memory_space<vmem>>, %arg25: memref<8x1xf32, #tpu.memory_space<vmem>>, %arg26: memref<8x1xf32, #tpu.memory_space<vmem>>) attributes {dimension_semantics = [#tpu.dimension_semantics<parallel>, #tpu.dimension_semantics<arbitrary>, #tpu.dimension_semantics<arbitrary>], iteration_bounds = array<i64: 2, 2, 2>, scalar_prefetch = 0 : i64, scratch_operands = 16 : i64, tpu.core_type = #tpu.core_type<tc>, window_params = [{transform_indices = @transform_0, window_bounds = array<i64: 8, 32>}, {transform_indices = @transform_1, window_bounds = array<i64: 32, 128>}, {transform_indices = @transform_2, window_bounds = array<i64: 8, 1>}, {transform_indices = @transform_3, window_bounds = array<i64: 8, 1>}, {transform_indices = @transform_4, window_bounds = array<i64: 8, 1>}, {transform_indices = @transform_5, window_bounds = array<i64: 1, 128>}, {pipeline_mode = #tpu.pipeline_mode<synchronous>, transform_indices = @transform_6, window_bounds = array<i64: 1, 3>}, {transform_indices = @transform_7, window_bounds = array<i64: 8, 128>}]} {
    %c0 = arith.constant 0 : index
    %c0_0 = arith.constant 0 : index
    %0 = vector.load %arg8[%c0, %c0_0] : memref<1x128xi32, #tpu.memory_space<vmem>>, vector<1x128xi32>
    %c0_1 = arith.constant 0 : index
    %c0_2 = arith.constant 0 : index
    %1 = vector.load %arg5[%c0_1, %c0_2] : memref<8x1xi32, #tpu.memory_space<vmem>>, vector<8x1xi32>
    %c0_3 = arith.constant 0 : index
    %c0_4 = arith.constant 0 : index
    %2 = vector.load %arg6[%c0_3, %c0_4] : memref<8x1xi32, #tpu.memory_space<vmem>>, vector<8x1xi32>
    %c128_i32 = arith.constant 128 : i32
    %3 = arith.muli %arg2, %c128_i32 : i32
    %4 = tpu.iota {dimensions = array<i32: 1>} : vector<1x128xi32>
    %5 = vector.broadcast %3 : i32 to vector<1x128xi32>
    %6 = arith.addi %5, %4 : vector<1x128xi32>
    %c256_i32 = arith.constant 256 : i32
    %7 = vector.broadcast %c256_i32 : i32 to vector<1x128xi32>
    %8 = arith.cmpi slt, %6, %7 : vector<1x128xi32>
    %9 = vector.broadcast %6 : vector<1x128xi32> to vector<8x128xi32>
    %10 = vector.broadcast %1 : vector<8x1xi32> to vector<8x128xi32>
    %11 = arith.cmpi eq, %9, %10 : vector<8x128xi32>
    %cst = arith.constant dense<true> : vector<8x128xi1>
    %12 = arith.xori %11, %cst : vector<8x128xi1>
    %13 = tpu.iota {dimensions = array<i32: 0>} : vector<3x128xi32>
    %14 = vector.broadcast %0 : vector<1x128xi32> to vector<3x128xi32>
    %15 = arith.cmpi eq, %13, %14 : vector<3x128xi32>
    %16 = arith.extui %15 : vector<3x128xi1> to vector<3x128xi32>
    %17 = arith.sitofp %16 : vector<3x128xi32> to vector<3x128xf32>
    %18 = vector.broadcast %0 : vector<1x128xi32> to vector<8x128xi32>
    %19 = vector.broadcast %2 : vector<8x1xi32> to vector<8x128xi32>
    %20 = arith.cmpi ne, %18, %19 : vector<8x128xi32>
    %21 = vector.broadcast %8 : vector<1x128xi1> to vector<8x128xi1>
    %22 = arith.andi %20, %21 : vector<8x128xi1>
    %c0_i32 = arith.constant 0 : i32
    %23 = arith.cmpi eq, %arg1, %c0_i32 : i32
    %c0_i32_5 = arith.constant 0 : i32
    %24 = arith.cmpi eq, %arg2, %c0_i32_5 : i32
    %25 = arith.andi %23, %24 : i1
    %26 = arith.extui %25 : i1 to i32
    %c0_i32_6 = arith.constant 0 : i32
    %27 = arith.cmpi ne, %26, %c0_i32_6 : i32
    scf.if %27 {
      %c0_16 = arith.constant 0 : index
      %c0_17 = arith.constant 0 : index
      %44 = vector.load %arg3[%c0_16, %c0_17] : memref<8x32xf32, #tpu.memory_space<vmem>>, vector<8x32xf32>
      %45 = arith.mulf %44, %44 : vector<8x32xf32>
      %cst_18 = arith.constant dense<0.000000e+00> : vector<8xf32>
      %46 = vector.multi_reduction <add>, %45, %cst_18 [1] : vector<8x32xf32> to vector<8xf32>
      %47 = vector.shape_cast %46 : vector<8xf32> to vector<8x1xf32>
      %48 = math.sqrt %47 : vector<8x1xf32>
      %cst_19 = arith.constant 9.99999996E-13 : f32
      %49 = vector.broadcast %cst_19 : f32 to vector<8x1xf32>
      %50 = arith.maximumf %48, %49 : vector<8x1xf32>
      %51 = vector.broadcast %50 : vector<8x1xf32> to vector<8x32xf32>
      %52 = arith.divf %44, %51 : vector<8x32xf32>
      %53 = arith.truncf %52 : vector<8x32xf32> to vector<8x32xbf16>
      %c0_20 = arith.constant 0 : index
      %c0_21 = arith.constant 0 : index
      %54 = vector.load %arg11[%c0_20, %c0_21] : memref<8x32xbf16, #tpu.memory_space<vmem>>, vector<8x32xbf16>
      tpu.vector_store %arg11[%c0_20, %c0_21], %53 {strides = array<i32>} : memref<8x32xbf16, #tpu.memory_space<vmem>>, vector<8x32xbf16>,
      %cst_22 = arith.constant -1.000000e+30 : f32
      %55 = vector.broadcast %cst_22 : f32 to vector<8x3xf32>
      %c0_23 = arith.constant 0 : index
      %c0_24 = arith.constant 0 : index
      %56 = vector.load %arg13[%c0_23, %c0_24] : memref<8x3xf32, #tpu.memory_space<vmem>>, vector<8x3xf32>
      tpu.vector_store %arg13[%c0_23, %c0_24], %55 {strides = array<i32>} : memref<8x3xf32, #tpu.memory_space<vmem>>, vector<8x3xf32>,
      %cst_25 = arith.constant 0.000000e+00 : f32
      %57 = vector.broadcast %cst_25 : f32 to vector<8x3xf32>
      %c0_26 = arith.constant 0 : index
      %c0_27 = arith.constant 0 : index
      %58 = vector.load %arg14[%c0_26, %c0_27] : memref<8x3xf32, #tpu.memory_space<vmem>>, vector<8x3xf32>
      tpu.vector_store %arg14[%c0_26, %c0_27], %57 {strides = array<i32>} : memref<8x3xf32, #tpu.memory_space<vmem>>, vector<8x3xf32>,
      %cst_28 = arith.constant -1.000000e+30 : f32
      %59 = vector.broadcast %cst_28 : f32 to vector<8x1xf32>
      %c0_29 = arith.constant 0 : index
      %c0_30 = arith.constant 0 : index
      %60 = vector.load %arg15[%c0_29, %c0_30] : memref<8x1xf32, #tpu.memory_space<vmem>>, vector<8x1xf32>
      tpu.vector_store %arg15[%c0_29, %c0_30], %59 {strides = array<i32>} : memref<8x1xf32, #tpu.memory_space<vmem>>, vector<8x1xf32>,
      %cst_31 = arith.constant 0.000000e+00 : f32
      %61 = vector.broadcast %cst_31 : f32 to vector<8x1xf32>
      %c0_32 = arith.constant 0 : index
      %c0_33 = arith.constant 0 : index
      %62 = vector.load %arg16[%c0_32, %c0_33] : memref<8x1xf32, #tpu.memory_space<vmem>>, vector<8x1xf32>
      tpu.vector_store %arg16[%c0_32, %c0_33], %61 {strides = array<i32>} : memref<8x1xf32, #tpu.memory_space<vmem>>, vector<8x1xf32>,
      %cst_34 = arith.constant 0.000000e+00 : f32
      %63 = vector.broadcast %cst_34 : f32 to vector<8x3xf32>
      %c0_35 = arith.constant 0 : index
      %c0_36 = arith.constant 0 : index
      %64 = vector.load %arg22[%c0_35, %c0_36] : memref<8x3xf32, #tpu.memory_space<vmem>>, vector<8x3xf32>
      tpu.vector_store %arg22[%c0_35, %c0_36], %63 {strides = array<i32>} : memref<8x3xf32, #tpu.memory_space<vmem>>, vector<8x3xf32>,
      %cst_37 = arith.constant 0.000000e+00 : f32
      %65 = vector.broadcast %cst_37 : f32 to vector<8x3xf32>
      %c0_38 = arith.constant 0 : index
      %c0_39 = arith.constant 0 : index
      %66 = vector.load %arg23[%c0_38, %c0_39] : memref<8x3xf32, #tpu.memory_space<vmem>>, vector<8x3xf32>
      tpu.vector_store %arg23[%c0_38, %c0_39], %65 {strides = array<i32>} : memref<8x3xf32, #tpu.memory_space<vmem>>, vector<8x3xf32>,
      %cst_40 = arith.constant 0.000000e+00 : f32
      %67 = vector.broadcast %cst_40 : f32 to vector<8x3xf32>
      %c0_41 = arith.constant 0 : index
      %c0_42 = arith.constant 0 : index
      %68 = vector.load %arg24[%c0_41, %c0_42] : memref<8x3xf32, #tpu.memory_space<vmem>>, vector<8x3xf32>
      tpu.vector_store %arg24[%c0_41, %c0_42], %67 {strides = array<i32>} : memref<8x3xf32, #tpu.memory_space<vmem>>, vector<8x3xf32>,
      %cst_43 = arith.constant 0.000000e+00 : f32
      %69 = vector.broadcast %cst_43 : f32 to vector<8x1xf32>
      %c0_44 = arith.constant 0 : index
      %c0_45 = arith.constant 0 : index
      %70 = vector.load %arg25[%c0_44, %c0_45] : memref<8x1xf32, #tpu.memory_space<vmem>>, vector<8x1xf32>
      tpu.vector_store %arg25[%c0_44, %c0_45], %69 {strides = array<i32>} : memref<8x1xf32, #tpu.memory_space<vmem>>, vector<8x1xf32>,
      %cst_46 = arith.constant 0.000000e+00 : f32
      %71 = vector.broadcast %cst_46 : f32 to vector<8x1xf32>
      %c0_47 = arith.constant 0 : index
      %c0_48 = arith.constant 0 : index
      %72 = vector.load %arg26[%c0_47, %c0_48] : memref<8x1xf32, #tpu.memory_space<vmem>>, vector<8x1xf32>
      tpu.vector_store %arg26[%c0_47, %c0_48], %71 {strides = array<i32>} : memref<8x1xf32, #tpu.memory_space<vmem>>, vector<8x1xf32>,
    } else {
    }
    %c0_i32_7 = arith.constant 0 : i32
    %28 = arith.cmpi eq, %arg1, %c0_i32_7 : i32
    %29 = arith.extui %28 : i1 to i32
    %c0_i32_8 = arith.constant 0 : i32
    %30 = arith.cmpi ne, %29, %c0_i32_8 : i32
    scf.if %30 {
      %c0_16 = arith.constant 0 : index
      %c0_17 = arith.constant 0 : index
      %44 = vector.load %arg4[%c0_16, %c0_17] : memref<32x128xbf16, #tpu.memory_space<vmem>>, vector<32x128xbf16>
      %c0_18 = arith.constant 0 : index
      %c0_19 = arith.constant 0 : index
      %45 = vector.load %arg11[%c0_18, %c0_19] : memref<8x32xbf16, #tpu.memory_space<vmem>>, vector<8x32xbf16>
      %cst_20 = arith.constant dense<0.000000e+00> : vector<8x128xf32>
      %46 = tpu.matmul %45, %44, %cst_20 {dimension_numbers = #tpu.dot_dimension_numbers<[1], [0], [0], [1], [0, 0, 1, 1], [], []>} : vector<8x32xbf16>, vector<32x128xbf16>, vector<8x128xf32> -> vector<8x128xf32>
      %47 = arith.index_cast %arg2 : i32 to index
      %c0_21 = arith.constant 0 : index
      %c0_22 = arith.constant 0 : index
      %48 = vector.load %arg12[%47, %c0_21, %c0_22] : memref<2x8x128xf32, #tpu.memory_space<vmem>>, vector<1x8x128xf32>
      %49 = vector.shape_cast %48 : vector<1x8x128xf32> to vector<8x128xf32>
      %50 = vector.shape_cast %46 : vector<8x128xf32> to vector<1x8x128xf32>
      tpu.vector_store %arg12[%47, %c0_21, %c0_22], %50 {strides = array<i32>} : memref<2x8x128xf32, #tpu.memory_space<vmem>>, vector<1x8x128xf32>,
      %cst_23 = arith.constant 2.000000e+01 : f32
      %51 = vector.broadcast %cst_23 : f32 to vector<8x128xf32>
      %52 = arith.mulf %46, %51 : vector<8x128xf32>
      %cst_24 = arith.constant -1.000000e+30 : f32
      %53 = vector.broadcast %cst_24 : f32 to vector<8x128xf32>
      %54 = arith.select %12, %46, %53 : vector<8x128xi1>, vector<8x128xf32>
      %c0_i32_25 = arith.constant 0 : i32
      %55 = vector.broadcast %c0_i32_25 : i32 to vector<1x128xi32>
      %56 = arith.cmpi eq, %0, %55 : vector<1x128xi32>
      %cst_26 = arith.constant -1.000000e+30 : f32
      %57 = vector.shape_cast %56 : vector<1x128xi1> to vector<1x128xi1>
      %58 = vector.broadcast %57 : vector<1x128xi1> to vector<8x128xi1>
      %59 = vector.broadcast %cst_26 : f32 to vector<8x128xf32>
      %60 = arith.select %58, %54, %59 : vector<8x128xi1>, vector<8x128xf32>
      %cst_27 = arith.constant dense<0xFF800000> : vector<8xf32>
      %61 = vector.multi_reduction <maximumf>, %60, %cst_27 [1] : vector<8x128xf32> to vector<8xf32>
      %62 = vector.shape_cast %61 : vector<8xf32> to vector<8x1xf32>
      %c1_i32_28 = arith.constant 1 : i32
      %63 = vector.broadcast %c1_i32_28 : i32 to vector<1x128xi32>
      %64 = arith.cmpi eq, %0, %63 : vector<1x128xi32>
      %cst_29 = arith.constant -1.000000e+30 : f32
      %65 = vector.shape_cast %64 : vector<1x128xi1> to vector<1x128xi1>
      %66 = vector.broadcast %65 : vector<1x128xi1> to vector<8x128xi1>
      %67 = vector.broadcast %cst_29 : f32 to vector<8x128xf32>
      %68 = arith.select %66, %54, %67 : vector<8x128xi1>, vector<8x128xf32>
      %cst_30 = arith.constant dense<0xFF800000> : vector<8xf32>
      %69 = vector.multi_reduction <maximumf>, %68, %cst_30 [1] : vector<8x128xf32> to vector<8xf32>
      %70 = vector.shape_cast %69 : vector<8xf32> to vector<8x1xf32>
      %c2_i32 = arith.constant 2 : i32
      %71 = vector.broadcast %c2_i32 : i32 to vector<1x128xi32>
      %72 = arith.cmpi eq, %0, %71 : vector<1x128xi32>
      %cst_31 = arith.constant -1.000000e+30 : f32
      %73 = vector.shape_cast %72 : vector<1x128xi1> to vector<1x128xi1>
      %74 = vector.broadcast %73 : vector<1x128xi1> to vector<8x128xi1>
      %75 = vector.broadcast %cst_31 : f32 to vector<8x128xf32>
      %76 = arith.select %74, %54, %75 : vector<8x128xi1>, vector<8x128xf32>
      %cst_32 = arith.constant dense<0xFF800000> : vector<8xf32>
      %77 = vector.multi_reduction <maximumf>, %76, %cst_32 [1] : vector<8x128xf32> to vector<8xf32>
      %78 = vector.shape_cast %77 : vector<8xf32> to vector<8x1xf32>
      %c0_33 = arith.constant 0 : index
      %c0_34 = arith.constant 0 : index
      %79 = vector.load %arg13[%c0_33, %c0_34] : memref<8x3xf32, #tpu.memory_space<vmem>>, vector<8x3xf32>
      %80 = tpu.concatenate %62, %70, %78 in 1 : vector<8x1xf32>, vector<8x1xf32>, vector<8x1xf32> -> vector<8x3xf32>
      %81 = arith.maximumf %79, %80 : vector<8x3xf32>
      %c0_35 = arith.constant 0 : index
      %c0_36 = arith.constant 0 : index
      %82 = vector.load %arg13[%c0_35, %c0_36] : memref<8x3xf32, #tpu.memory_space<vmem>>, vector<8x3xf32>
      tpu.vector_store %arg13[%c0_35, %c0_36], %81 {strides = array<i32>} : memref<8x3xf32, #tpu.memory_space<vmem>>, vector<8x3xf32>,
      %c0_37 = arith.constant 0 : index
      %c0_38 = arith.constant 0 : index
      %83 = vector.load %arg16[%c0_37, %c0_38] : memref<8x1xf32, #tpu.memory_space<vmem>>, vector<8x1xf32>
      %cst_39 = arith.constant 0.000000e+00 : f32
      %84 = vector.broadcast %cst_39 : f32 to vector<8x128xf32>
      %85 = arith.select %11, %46, %84 : vector<8x128xi1>, vector<8x128xf32>
      %cst_40 = arith.constant dense<0.000000e+00> : vector<8xf32>
      %86 = vector.multi_reduction <add>, %85, %cst_40 [1] : vector<8x128xf32> to vector<8xf32>
      %87 = vector.shape_cast %86 : vector<8xf32> to vector<8x1xf32>
      %88 = arith.addf %83, %87 : vector<8x1xf32>
      %c0_41 = arith.constant 0 : index
      %c0_42 = arith.constant 0 : index
      %89 = vector.load %arg16[%c0_41, %c0_42] : memref<8x1xf32, #tpu.memory_space<vmem>>, vector<8x1xf32>
      tpu.vector_store %arg16[%c0_41, %c0_42], %88 {strides = array<i32>} : memref<8x1xf32, #tpu.memory_space<vmem>>, vector<8x1xf32>,
      %c0_43 = arith.constant 0 : index
      %c0_44 = arith.constant 0 : index
      %90 = vector.load %arg15[%c0_43, %c0_44] : memref<8x1xf32, #tpu.memory_space<vmem>>, vector<8x1xf32>
      %cst_45 = arith.constant dense<0xFF800000> : vector<8xf32>
      %91 = vector.multi_reduction <maximumf>, %52, %cst_45 [1] : vector<8x128xf32> to vector<8xf32>
      %92 = vector.shape_cast %91 : vector<8xf32> to vector<8x1xf32>
      %93 = arith.maximumf %90, %92 : vector<8x1xf32>
      %94 = arith.subf %90, %93 : vector<8x1xf32>
      %95 = math.exp %94 : vector<8x1xf32>
      %96 = vector.broadcast %93 : vector<8x1xf32> to vector<8x128xf32>
      %97 = arith.subf %52, %96 : vector<8x128xf32>
      %98 = math.exp %97 : vector<8x128xf32>
      %cst_46 = arith.constant dense<0.000000e+00> : vector<8x3xf32>
      %99 = tpu.matmul %98, %17, %cst_46 {dimension_numbers = #tpu.dot_dimension_numbers<[1], [1], [0], [0], [0, 0, 1, 0], [], []>} : vector<8x128xf32>, vector<3x128xf32>, vector<8x3xf32> -> vector<8x3xf32>
      %c0_47 = arith.constant 0 : index
      %c0_48 = arith.constant 0 : index
      %100 = vector.load %arg14[%c0_47, %c0_48] : memref<8x3xf32, #tpu.memory_space<vmem>>, vector<8x3xf32>
      %101 = vector.broadcast %95 : vector<8x1xf32> to vector<8x3xf32>
      %102 = arith.mulf %100, %101 : vector<8x3xf32>
      %103 = arith.addf %102, %99 : vector<8x3xf32>
      %c0_49 = arith.constant 0 : index
      %c0_50 = arith.constant 0 : index
      %104 = vector.load %arg14[%c0_49, %c0_50] : memref<8x3xf32, #tpu.memory_space<vmem>>, vector<8x3xf32>
      tpu.vector_store %arg14[%c0_49, %c0_50], %103 {strides = array<i32>} : memref<8x3xf32, #tpu.memory_space<vmem>>, vector<8x3xf32>,
      %c0_51 = arith.constant 0 : index
      %c0_52 = arith.constant 0 : index
      %105 = vector.load %arg15[%c0_51, %c0_52] : memref<8x1xf32, #tpu.memory_space<vmem>>, vector<8x1xf32>
      tpu.vector_store %arg15[%c0_51, %c0_52], %93 {strides = array<i32>} : memref<8x1xf32, #tpu.memory_space<vmem>>, vector<8x1xf32>,
    } else {
    }
    %c1_i32 = arith.constant 1 : i32
    %31 = arith.cmpi eq, %arg1, %c1_i32 : i32
    %c0_i32_9 = arith.constant 0 : i32
    %32 = arith.cmpi eq, %arg2, %c0_i32_9 : i32
    %33 = arith.andi %31, %32 : i1
    %34 = arith.extui %33 : i1 to i32
    %c0_i32_10 = arith.constant 0 : i32
    %35 = arith.cmpi ne, %34, %c0_i32_10 : i32
    scf.if %35 {
      %c0_16 = arith.constant 0 : index
      %c0_17 = arith.constant 0 : index
      %44 = vector.load %arg9[%c0_16, %c0_17] : memref<1x3xf32, #tpu.memory_space<vmem>>, vector<1x3xf32>
      %45 = tpu.iota {dimensions = array<i32: 1>} : vector<8x3xi32>
      %46 = vector.broadcast %2 : vector<8x1xi32> to vector<8x3xi32>
      %47 = arith.cmpi eq, %45, %46 : vector<8x3xi32>
      %48 = arith.extui %47 : vector<8x3xi1> to vector<8x3xi32>
      %49 = arith.sitofp %48 : vector<8x3xi32> to vector<8x3xf32>
      %c0_18 = arith.constant 0 : index
      %c0_19 = arith.constant 0 : index
      %50 = vector.load %arg7[%c0_18, %c0_19] : memref<8x1xi32, #tpu.memory_space<vmem>>, vector<8x1xi32>
      %51 = vector.broadcast %50 : vector<8x1xi32> to vector<8x3xi32>
      %52 = arith.cmpi eq, %45, %51 : vector<8x3xi32>
      %c0_20 = arith.constant 0 : index
      %c0_21 = arith.constant 0 : index
      %53 = vector.load %arg13[%c0_20, %c0_21] : memref<8x3xf32, #tpu.memory_space<vmem>>, vector<8x3xf32>
      %c0_22 = arith.constant 0 : index
      %c0_23 = arith.constant 0 : index
      %54 = vector.load %arg16[%c0_22, %c0_23] : memref<8x1xf32, #tpu.memory_space<vmem>>, vector<8x1xf32>
      %c0_24 = arith.constant 0 : index
      %c0_25 = arith.constant 0 : index
      %55 = vector.load %arg15[%c0_24, %c0_25] : memref<8x1xf32, #tpu.memory_space<vmem>>, vector<8x1xf32>
      %c0_26 = arith.constant 0 : index
      %c0_27 = arith.constant 0 : index
      %56 = vector.load %arg14[%c0_26, %c0_27] : memref<8x3xf32, #tpu.memory_space<vmem>>, vector<8x3xf32>
      %cst_28 = arith.constant dense<0.000000e+00> : vector<8xf32>
      %57 = vector.multi_reduction <add>, %56, %cst_28 [1] : vector<8x3xf32> to vector<8xf32>
      %58 = vector.shape_cast %57 : vector<8xf32> to vector<8x1xf32>
      %59 = arith.mulf %56, %49 : vector<8x3xf32>
      %cst_29 = arith.constant dense<0.000000e+00> : vector<8xf32>
      %60 = vector.multi_reduction <add>, %59, %cst_29 [1] : vector<8x3xf32> to vector<8xf32>
      %61 = vector.shape_cast %60 : vector<8xf32> to vector<8x1xf32>
      %62 = arith.subf %58, %61 : vector<8x1xf32>
      %cst_30 = arith.constant -1.000000e+30 : f32
      %63 = vector.shape_cast %54 : vector<8x1xf32> to vector<8x1xf32>
      %64 = vector.broadcast %63 : vector<8x1xf32> to vector<8x3xf32>
      %65 = vector.broadcast %cst_30 : f32 to vector<8x3xf32>
      %66 = arith.select %52, %64, %65 : vector<8x3xi1>, vector<8x3xf32>
      %67 = arith.maximumf %53, %66 : vector<8x3xf32>
      %cst_31 = arith.constant 2.560000e+02 : f32
      %68 = vector.broadcast %cst_31 : f32 to vector<1x3xf32>
      %69 = arith.cmpf olt, %44, %68 : vector<1x3xf32>
      %70 = vector.broadcast %69 : vector<1x3xi1> to vector<8x3xi1>
      %71 = arith.ori %70, %52 : vector<8x3xi1>
      %cst_32 = arith.constant -1.000000e+00 : f32
      %72 = vector.broadcast %cst_32 : f32 to vector<8x3xf32>
      %73 = arith.maximumf %53, %72 : vector<8x3xf32>
      %74 = arith.select %71, %73, %53 : vector<8x3xi1>, vector<8x3xf32>
      %cst_33 = arith.constant 0.899999976 : f32
      %75 = vector.broadcast %cst_33 : f32 to vector<8x3xf32>
      %76 = arith.mulf %74, %75 : vector<8x3xf32>
      %c0_34 = arith.constant 0 : index
      %c0_35 = arith.constant 0 : index
      %77 = vector.load %arg17[%c0_34, %c0_35] : memref<8x3xf32, #tpu.memory_space<vmem>>, vector<8x3xf32>
      tpu.vector_store %arg17[%c0_34, %c0_35], %76 {strides = array<i32>} : memref<8x3xf32, #tpu.memory_space<vmem>>, vector<8x3xf32>,
      %cst_36 = arith.constant 2.560000e+02 : f32
      %78 = vector.broadcast %cst_36 : f32 to vector<1x3xf32>
      %79 = arith.cmpf olt, %44, %78 : vector<1x3xf32>
      %cst_37 = arith.constant 2.000000e+01 : f32
      %80 = vector.broadcast %cst_37 : f32 to vector<8x3xf32>
      %81 = arith.mulf %67, %80 : vector<8x3xf32>
      %cst_38 = arith.constant 0.000000e+00 : f32
      %82 = vector.broadcast %cst_38 : f32 to vector<8x3xf32>
      %83 = arith.maximumf %81, %82 : vector<8x3xf32>
      %cst_39 = arith.constant 2.000000e+01 : f32
      %84 = vector.broadcast %cst_39 : f32 to vector<8x3xf32>
      %85 = arith.mulf %67, %84 : vector<8x3xf32>
      %86 = vector.shape_cast %79 : vector<1x3xi1> to vector<1x3xi1>
      %87 = vector.broadcast %86 : vector<1x3xi1> to vector<8x3xi1>
      %88 = arith.select %87, %83, %85 : vector<8x3xi1>, vector<8x3xf32>
      %89 = vector.broadcast %55 : vector<8x1xf32> to vector<8x3xf32>
      %90 = arith.subf %89, %88 : vector<8x3xf32>
      %91 = math.exp %90 : vector<8x3xf32>
      %92 = arith.mulf %91, %56 : vector<8x3xf32>
      %cst_40 = arith.constant 2.560000e+02 : f32
      %93 = vector.broadcast %cst_40 : f32 to vector<1x3xf32>
      %94 = arith.subf %93, %44 : vector<1x3xf32>
      %cst_41 = arith.constant 0.000000e+00 : f32
      %95 = vector.broadcast %cst_41 : f32 to vector<8x3xf32>
      %96 = arith.subf %95, %88 : vector<8x3xf32>
      %97 = math.exp %96 : vector<8x3xf32>
      %98 = vector.broadcast %94 : vector<1x3xf32> to vector<8x3xf32>
      %99 = arith.mulf %98, %97 : vector<8x3xf32>
      %100 = arith.addf %92, %99 : vector<8x3xf32>
      %101 = math.log %100 : vector<8x3xf32>
      %102 = arith.addf %88, %101 : vector<8x3xf32>
      %c0_42 = arith.constant 0 : index
      %c0_43 = arith.constant 0 : index
      %103 = vector.load %arg18[%c0_42, %c0_43] : memref<8x3xf32, #tpu.memory_space<vmem>>, vector<8x3xf32>
      tpu.vector_store %arg18[%c0_42, %c0_43], %102 {strides = array<i32>} : memref<8x3xf32, #tpu.memory_space<vmem>>, vector<8x3xf32>,
      %104 = vector.broadcast %44 : vector<1x3xf32> to vector<8x3xf32>
      %105 = arith.mulf %49, %104 : vector<8x3xf32>
      %cst_44 = arith.constant dense<0.000000e+00> : vector<8xf32>
      %106 = vector.multi_reduction <add>, %105, %cst_44 [1] : vector<8x3xf32> to vector<8xf32>
      %107 = vector.shape_cast %106 : vector<8xf32> to vector<8x1xf32>
      %cst_45 = arith.constant 5.000000e-01 : f32
      %108 = vector.broadcast %cst_45 : f32 to vector<8x3xf32>
      %109 = arith.cmpf ogt, %49, %108 : vector<8x3xf32>
      %cst_46 = arith.constant -1.000000e+30 : f32
      %110 = vector.broadcast %cst_46 : f32 to vector<8x3xf32>
      %111 = arith.select %109, %110, %67 : vector<8x3xi1>, vector<8x3xf32>
      %cst_47 = arith.constant dense<0xFF800000> : vector<8xf32>
      %112 = vector.multi_reduction <maximumf>, %111, %cst_47 [1] : vector<8x3xf32> to vector<8xf32>
      %113 = vector.shape_cast %112 : vector<8xf32> to vector<8x1xf32>
      %cst_48 = arith.constant 0.000000e+00 : f32
      %114 = vector.broadcast %cst_48 : f32 to vector<8x1xf32>
      %115 = arith.cmpf ogt, %107, %114 : vector<8x1xf32>
      %cst_49 = arith.constant -1.000000e+00 : f32
      %116 = vector.broadcast %cst_49 : f32 to vector<8x1xf32>
      %117 = arith.maximumf %113, %116 : vector<8x1xf32>
      %118 = arith.select %115, %117, %113 : vector<8x1xi1>, vector<8x1xf32>
      %cst_50 = arith.constant 0.899999976 : f32
      %119 = vector.broadcast %cst_50 : f32 to vector<8x1xf32>
      %120 = arith.mulf %118, %119 : vector<8x1xf32>
      %c0_51 = arith.constant 0 : index
      %c0_52 = arith.constant 0 : index
      %121 = vector.load %arg19[%c0_51, %c0_52] : memref<8x1xf32, #tpu.memory_space<vmem>>, vector<8x1xf32>
      tpu.vector_store %arg19[%c0_51, %c0_52], %120 {strides = array<i32>} : memref<8x1xf32, #tpu.memory_space<vmem>>, vector<8x1xf32>,
      %cst_53 = arith.constant 0.000000e+00 : f32
      %122 = vector.broadcast %cst_53 : f32 to vector<8x1xf32>
      %123 = arith.cmpf ogt, %107, %122 : vector<8x1xf32>
      %cst_54 = arith.constant 2.000000e+01 : f32
      %124 = vector.broadcast %cst_54 : f32 to vector<8x1xf32>
      %125 = arith.mulf %113, %124 : vector<8x1xf32>
      %cst_55 = arith.constant 0.000000e+00 : f32
      %126 = vector.broadcast %cst_55 : f32 to vector<8x1xf32>
      %127 = arith.maximumf %125, %126 : vector<8x1xf32>
      %cst_56 = arith.constant 2.000000e+01 : f32
      %128 = vector.broadcast %cst_56 : f32 to vector<8x1xf32>
      %129 = arith.mulf %113, %128 : vector<8x1xf32>
      %130 = arith.select %123, %127, %129 : vector<8x1xi1>, vector<8x1xf32>
      %131 = arith.subf %55, %130 : vector<8x1xf32>
      %132 = math.exp %131 : vector<8x1xf32>
      %133 = arith.mulf %132, %62 : vector<8x1xf32>
      %cst_57 = arith.constant 0.000000e+00 : f32
      %134 = vector.broadcast %cst_57 : f32 to vector<8x1xf32>
      %135 = arith.subf %134, %130 : vector<8x1xf32>
      %136 = math.exp %135 : vector<8x1xf32>
      %137 = arith.mulf %107, %136 : vector<8x1xf32>
      %138 = arith.addf %133, %137 : vector<8x1xf32>
      %139 = math.log %138 : vector<8x1xf32>
      %140 = arith.addf %130, %139 : vector<8x1xf32>
      %c0_58 = arith.constant 0 : index
      %c0_59 = arith.constant 0 : index
      %141 = vector.load %arg20[%c0_58, %c0_59] : memref<8x1xf32, #tpu.memory_space<vmem>>, vector<8x1xf32>
      tpu.vector_store %arg20[%c0_58, %c0_59], %140 {strides = array<i32>} : memref<8x1xf32, #tpu.memory_space<vmem>>, vector<8x1xf32>,
      %142 = arith.mulf %102, %49 : vector<8x3xf32>
      %cst_60 = arith.constant dense<0.000000e+00> : vector<8xf32>
      %143 = vector.multi_reduction <add>, %142, %cst_60 [1] : vector<8x3xf32> to vector<8xf32>
      %144 = vector.shape_cast %143 : vector<8xf32> to vector<8x1xf32>
      %c0_61 = arith.constant 0 : index
      %c0_62 = arith.constant 0 : index
      %145 = vector.load %arg7[%c0_61, %c0_62] : memref<8x1xi32, #tpu.memory_space<vmem>>, vector<8x1xi32>
      %146 = arith.cmpi eq, %145, %2 : vector<8x1xi32>
      %cst_63 = arith.constant 2.000000e+01 : f32
      %147 = vector.broadcast %cst_63 : f32 to vector<8x1xf32>
      %148 = arith.mulf %54, %147 : vector<8x1xf32>
      %cst_64 = arith.constant 0.000000e+00 : f32
      %149 = vector.broadcast %cst_64 : f32 to vector<8x1xf32>
      %150 = arith.select %146, %148, %149 : vector<8x1xi1>, vector<8x1xf32>
      %151 = arith.subf %150, %144 : vector<8x1xf32>
      %cst_65 = arith.constant -18.420681 : f32
      %152 = vector.broadcast %cst_65 : f32 to vector<8x1xf32>
      %153 = arith.maximumf %151, %152 : vector<8x1xf32>
      %cst_66 = arith.constant 0.000000e+00 : f32
      %154 = vector.broadcast %cst_66 : f32 to vector<8x1xf32>
      %155 = arith.subf %154, %153 : vector<8x1xf32>
      %c0_67 = arith.constant 0 : index
      %c0_68 = arith.constant 0 : index
      %156 = vector.load %arg21[%c0_67, %c0_68] : memref<8x1xf32, #tpu.memory_space<vmem>>, vector<8x1xf32>
      tpu.vector_store %arg21[%c0_67, %c0_68], %155 {strides = array<i32>} : memref<8x1xf32, #tpu.memory_space<vmem>>, vector<8x1xf32>,
    } else {
    }
    %c1_i32_11 = arith.constant 1 : i32
    %36 = arith.cmpi eq, %arg1, %c1_i32_11 : i32
    %37 = arith.extui %36 : i1 to i32
    %c0_i32_12 = arith.constant 0 : i32
    %38 = arith.cmpi ne, %37, %c0_i32_12 : i32
    scf.if %38 {
      %44 = arith.index_cast %arg2 : i32 to index
      %c0_16 = arith.constant 0 : index
      %c0_17 = arith.constant 0 : index
      %45 = vector.load %arg12[%44, %c0_16, %c0_17] : memref<2x8x128xf32, #tpu.memory_space<vmem>>, vector<1x8x128xf32>
      %46 = vector.shape_cast %45 : vector<1x8x128xf32> to vector<8x128xf32>
      %cst_18 = arith.constant 2.000000e+01 : f32
      %47 = vector.broadcast %cst_18 : f32 to vector<8x128xf32>
      %48 = arith.mulf %46, %47 : vector<8x128xf32>
      %c0_19 = arith.constant 0 : index
      %c0_20 = arith.constant 0 : index
      %49 = vector.load %arg17[%c0_19, %c0_20] : memref<8x3xf32, #tpu.memory_space<vmem>>, vector<8x3xf32>
      %cst_21 = arith.constant dense<0.000000e+00> : vector<8x128xf32>
      %50 = tpu.matmul %49, %17, %cst_21 {dimension_numbers = #tpu.dot_dimension_numbers<[1], [0], [0], [1], [0, 0, 1, 1], [], []>} : vector<8x3xf32>, vector<3x128xf32>, vector<8x128xf32> -> vector<8x128xf32>
      %c0_22 = arith.constant 0 : index
      %c0_23 = arith.constant 0 : index
      %51 = vector.load %arg18[%c0_22, %c0_23] : memref<8x3xf32, #tpu.memory_space<vmem>>, vector<8x3xf32>
      %cst_24 = arith.constant dense<0.000000e+00> : vector<8x128xf32>
      %52 = tpu.matmul %51, %17, %cst_24 {dimension_numbers = #tpu.dot_dimension_numbers<[1], [0], [0], [1], [0, 0, 1, 1], [], []>} : vector<8x3xf32>, vector<3x128xf32>, vector<8x128xf32> -> vector<8x128xf32>
      %cst_25 = arith.constant -1.000000e+00 : f32
      %53 = vector.broadcast %cst_25 : f32 to vector<8x128xf32>
      %54 = arith.select %12, %46, %53 : vector<8x128xi1>, vector<8x128xf32>
      %55 = arith.cmpf ogt, %54, %50 : vector<8x128xf32>
      %56 = arith.extui %55 : vector<8x128xi1> to vector<8x128xi32>
      %57 = arith.sitofp %56 : vector<8x128xi32> to vector<8x128xf32>
      %58 = arith.subf %48, %52 : vector<8x128xf32>
      %cst_26 = arith.constant -18.420681 : f32
      %59 = vector.broadcast %cst_26 : f32 to vector<8x128xf32>
      %60 = arith.maximumf %58, %59 : vector<8x128xf32>
      %c0_27 = arith.constant 0 : index
      %c0_28 = arith.constant 0 : index
      %61 = vector.load %arg22[%c0_27, %c0_28] : memref<8x3xf32, #tpu.memory_space<vmem>>, vector<8x3xf32>
      %cst_29 = arith.constant dense<0.000000e+00> : vector<8x3xf32>
      %62 = tpu.matmul %57, %17, %cst_29 {dimension_numbers = #tpu.dot_dimension_numbers<[1], [1], [0], [0], [0, 0, 1, 0], [], []>} : vector<8x128xf32>, vector<3x128xf32>, vector<8x3xf32> -> vector<8x3xf32>
      %63 = arith.addf %61, %62 : vector<8x3xf32>
      %c0_30 = arith.constant 0 : index
      %c0_31 = arith.constant 0 : index
      %64 = vector.load %arg22[%c0_30, %c0_31] : memref<8x3xf32, #tpu.memory_space<vmem>>, vector<8x3xf32>
      tpu.vector_store %arg22[%c0_30, %c0_31], %63 {strides = array<i32>} : memref<8x3xf32, #tpu.memory_space<vmem>>, vector<8x3xf32>,
      %c0_32 = arith.constant 0 : index
      %c0_33 = arith.constant 0 : index
      %65 = vector.load %arg24[%c0_32, %c0_33] : memref<8x3xf32, #tpu.memory_space<vmem>>, vector<8x3xf32>
      %66 = arith.mulf %46, %57 : vector<8x128xf32>
      %cst_34 = arith.constant dense<0.000000e+00> : vector<8x3xf32>
      %67 = tpu.matmul %66, %17, %cst_34 {dimension_numbers = #tpu.dot_dimension_numbers<[1], [1], [0], [0], [0, 0, 1, 0], [], []>} : vector<8x128xf32>, vector<3x128xf32>, vector<8x3xf32> -> vector<8x3xf32>
      %68 = arith.addf %65, %67 : vector<8x3xf32>
      %c0_35 = arith.constant 0 : index
      %c0_36 = arith.constant 0 : index
      %69 = vector.load %arg24[%c0_35, %c0_36] : memref<8x3xf32, #tpu.memory_space<vmem>>, vector<8x3xf32>
      tpu.vector_store %arg24[%c0_35, %c0_36], %68 {strides = array<i32>} : memref<8x3xf32, #tpu.memory_space<vmem>>, vector<8x3xf32>,
      %c0_37 = arith.constant 0 : index
      %c0_38 = arith.constant 0 : index
      %70 = vector.load %arg23[%c0_37, %c0_38] : memref<8x3xf32, #tpu.memory_space<vmem>>, vector<8x3xf32>
      %71 = arith.mulf %60, %57 : vector<8x128xf32>
      %cst_39 = arith.constant dense<0.000000e+00> : vector<8x3xf32>
      %72 = tpu.matmul %71, %17, %cst_39 {dimension_numbers = #tpu.dot_dimension_numbers<[1], [1], [0], [0], [0, 0, 1, 0], [], []>} : vector<8x128xf32>, vector<3x128xf32>, vector<8x3xf32> -> vector<8x3xf32>
      %73 = arith.addf %70, %72 : vector<8x3xf32>
      %c0_40 = arith.constant 0 : index
      %c0_41 = arith.constant 0 : index
      %74 = vector.load %arg23[%c0_40, %c0_41] : memref<8x3xf32, #tpu.memory_space<vmem>>, vector<8x3xf32>
      tpu.vector_store %arg23[%c0_40, %c0_41], %73 {strides = array<i32>} : memref<8x3xf32, #tpu.memory_space<vmem>>, vector<8x3xf32>,
      %75 = arith.extui %22 : vector<8x128xi1> to vector<8x128xi32>
      %76 = arith.sitofp %75 : vector<8x128xi32> to vector<8x128xf32>
      %cst_42 = arith.constant -1.000000e+00 : f32
      %77 = vector.broadcast %cst_42 : f32 to vector<8x128xf32>
      %78 = arith.select %22, %46, %77 : vector<8x128xi1>, vector<8x128xf32>
      %c0_43 = arith.constant 0 : index
      %c0_44 = arith.constant 0 : index
      %79 = vector.load %arg19[%c0_43, %c0_44] : memref<8x1xf32, #tpu.memory_space<vmem>>, vector<8x1xf32>
      %80 = vector.broadcast %79 : vector<8x1xf32> to vector<8x128xf32>
      %81 = arith.cmpf ogt, %78, %80 : vector<8x128xf32>
      %82 = arith.extui %81 : vector<8x128xi1> to vector<8x128xi32>
      %83 = arith.sitofp %82 : vector<8x128xi32> to vector<8x128xf32>
      %84 = arith.mulf %48, %76 : vector<8x128xf32>
      %c0_45 = arith.constant 0 : index
      %c0_46 = arith.constant 0 : index
      %85 = vector.load %arg20[%c0_45, %c0_46] : memref<8x1xf32, #tpu.memory_space<vmem>>, vector<8x1xf32>
      %86 = vector.broadcast %85 : vector<8x1xf32> to vector<8x128xf32>
      %87 = arith.subf %84, %86 : vector<8x128xf32>
      %cst_47 = arith.constant -18.420681 : f32
      %88 = vector.broadcast %cst_47 : f32 to vector<8x128xf32>
      %89 = arith.maximumf %87, %88 : vector<8x128xf32>
      %c0_48 = arith.constant 0 : index
      %c0_49 = arith.constant 0 : index
      %90 = vector.load %arg25[%c0_48, %c0_49] : memref<8x1xf32, #tpu.memory_space<vmem>>, vector<8x1xf32>
      %cst_50 = arith.constant dense<0.000000e+00> : vector<8xf32>
      %91 = vector.multi_reduction <add>, %83, %cst_50 [1] : vector<8x128xf32> to vector<8xf32>
      %92 = vector.shape_cast %91 : vector<8xf32> to vector<8x1xf32>
      %93 = arith.addf %90, %92 : vector<8x1xf32>
      %c0_51 = arith.constant 0 : index
      %c0_52 = arith.constant 0 : index
      %94 = vector.load %arg25[%c0_51, %c0_52] : memref<8x1xf32, #tpu.memory_space<vmem>>, vector<8x1xf32>
      tpu.vector_store %arg25[%c0_51, %c0_52], %93 {strides = array<i32>} : memref<8x1xf32, #tpu.memory_space<vmem>>, vector<8x1xf32>,
      %c0_53 = arith.constant 0 : index
      %c0_54 = arith.constant 0 : index
      %95 = vector.load %arg26[%c0_53, %c0_54] : memref<8x1xf32, #tpu.memory_space<vmem>>, vector<8x1xf32>
      %96 = arith.mulf %89, %83 : vector<8x128xf32>
      %cst_55 = arith.constant dense<0.000000e+00> : vector<8xf32>
      %97 = vector.multi_reduction <add>, %96, %cst_55 [1] : vector<8x128xf32> to vector<8xf32>
      %98 = vector.shape_cast %97 : vector<8xf32> to vector<8x1xf32>
      %99 = arith.addf %95, %98 : vector<8x1xf32>
      %c0_56 = arith.constant 0 : index
      %c0_57 = arith.constant 0 : index
      %100 = vector.load %arg26[%c0_56, %c0_57] : memref<8x1xf32, #tpu.memory_space<vmem>>, vector<8x1xf32>
      tpu.vector_store %arg26[%c0_56, %c0_57], %99 {strides = array<i32>} : memref<8x1xf32, #tpu.memory_space<vmem>>, vector<8x1xf32>,
    } else {
    }
    %c1_i32_13 = arith.constant 1 : i32
    %39 = arith.cmpi eq, %arg1, %c1_i32_13 : i32
    %c1_i32_14 = arith.constant 1 : i32
    %40 = arith.cmpi eq, %arg2, %c1_i32_14 : i32
    %41 = arith.andi %39, %40 : i1
    %42 = arith.extui %41 : i1 to i32
    %c0_i32_15 = arith.constant 0 : i32
    %43 = arith.cmpi ne, %42, %c0_i32_15 : i32
    scf.if %43 {
      %44 = tpu.iota {dimensions = array<i32: 1>} : vector<8x3xi32>
      %45 = vector.broadcast %2 : vector<8x1xi32> to vector<8x3xi32>
      %46 = arith.cmpi eq, %44, %45 : vector<8x3xi32>
      %47 = arith.extui %46 : vector<8x3xi1> to vector<8x3xi32>
      %48 = arith.sitofp %47 : vector<8x3xi32> to vector<8x3xf32>
      %c0_16 = arith.constant 0 : index
      %c0_17 = arith.constant 0 : index
      %49 = vector.load %arg22[%c0_16, %c0_17] : memref<8x3xf32, #tpu.memory_space<vmem>>, vector<8x3xf32>
      %cst_18 = arith.constant 1.000000e+00 : f32
      %50 = vector.broadcast %cst_18 : f32 to vector<8x3xf32>
      %51 = arith.addf %49, %50 : vector<8x3xf32>
      %c0_19 = arith.constant 0 : index
      %c0_20 = arith.constant 0 : index
      %52 = vector.load %arg23[%c0_19, %c0_20] : memref<8x3xf32, #tpu.memory_space<vmem>>, vector<8x3xf32>
      %cst_21 = arith.constant 0.000000e+00 : f32
      %53 = vector.broadcast %cst_21 : f32 to vector<8x3xf32>
      %54 = arith.subf %53, %52 : vector<8x3xf32>
      %55 = arith.divf %54, %51 : vector<8x3xf32>
      %56 = arith.mulf %55, %48 : vector<8x3xf32>
      %cst_22 = arith.constant dense<0.000000e+00> : vector<8xf32>
      %57 = vector.multi_reduction <add>, %56, %cst_22 [1] : vector<8x3xf32> to vector<8xf32>
      %58 = vector.shape_cast %57 : vector<8xf32> to vector<8x1xf32>
      %c0_23 = arith.constant 0 : index
      %c0_24 = arith.constant 0 : index
      %59 = vector.load %arg24[%c0_23, %c0_24] : memref<8x3xf32, #tpu.memory_space<vmem>>, vector<8x3xf32>
      %60 = arith.divf %59, %51 : vector<8x3xf32>
      %cst_25 = arith.constant 6.000000e-01 : f32
      %61 = vector.broadcast %cst_25 : f32 to vector<8x3xf32>
      %62 = arith.cmpf ogt, %60, %61 : vector<8x3xf32>
      %63 = arith.extui %62 : vector<8x3xi1> to vector<8x3xi32>
      %64 = arith.sitofp %63 : vector<8x3xi32> to vector<8x3xf32>
      %65 = arith.mulf %55, %64 : vector<8x3xf32>
      %c0_26 = arith.constant 0 : index
      %c0_27 = arith.constant 0 : index
      %66 = vector.load %arg26[%c0_26, %c0_27] : memref<8x1xf32, #tpu.memory_space<vmem>>, vector<8x1xf32>
      %cst_28 = arith.constant 0.000000e+00 : f32
      %67 = vector.broadcast %cst_28 : f32 to vector<8x1xf32>
      %68 = arith.subf %67, %66 : vector<8x1xf32>
      %c0_29 = arith.constant 0 : index
      %c0_30 = arith.constant 0 : index
      %69 = vector.load %arg25[%c0_29, %c0_30] : memref<8x1xf32, #tpu.memory_space<vmem>>, vector<8x1xf32>
      %cst_31 = arith.constant 1.000000e+00 : f32
      %70 = vector.broadcast %cst_31 : f32 to vector<8x1xf32>
      %71 = arith.addf %69, %70 : vector<8x1xf32>
      %72 = arith.divf %68, %71 : vector<8x1xf32>
      %c0_32 = arith.constant 0 : index
      %c0_33 = arith.constant 0 : index
      %73 = vector.load %arg21[%c0_32, %c0_33] : memref<8x1xf32, #tpu.memory_space<vmem>>, vector<8x1xf32>
      %cst_34 = arith.constant 0.000000e+00 : f32
      %74 = vector.broadcast %cst_34 : f32 to vector<8x122xf32>
      %75 = tpu.concatenate %73, %58, %72, %65, %74 in 1 : vector<8x1xf32>, vector<8x1xf32>, vector<8x1xf32>, vector<8x3xf32>, vector<8x122xf32> -> vector<8x128xf32>
      %c0_35 = arith.constant 0 : index
      %c0_36 = arith.constant 0 : index
      %76 = vector.load %arg10[%c0_35, %c0_36] : memref<8x128xf32, #tpu.memory_space<vmem>>, vector<8x128xf32>
      tpu.vector_store %arg10[%c0_35, %c0_36], %75 {strides = array<i32>} : memref<8x128xf32, #tpu.memory_space<vmem>>, vector<8x128xf32>,
    } else {
    }
    return
  }
  func.func @transform_0(%arg0: i32, %arg1: i32, %arg2: i32) -> (i32, i32) {
    %c0_i32 = arith.constant 0 : i32
    %c0_i32_0 = arith.constant 0 : i32
    return %arg0, %c0_i32 : i32, i32
  }
  func.func @transform_1(%arg0: i32, %arg1: i32, %arg2: i32) -> (i32, i32) {
    %c1_i32 = arith.constant 1 : i32
    %0 = arith.subi %c1_i32, %arg1 : i32
    %1 = arith.muli %arg2, %0 : i32
    %c1_i32_0 = arith.constant 1 : i32
    %2 = arith.muli %c1_i32_0, %arg1 : i32
    %3 = arith.addi %1, %2 : i32
    %c0_i32 = arith.constant 0 : i32
    %c0_i32_1 = arith.constant 0 : i32
    return %c0_i32, %3 : i32, i32
  }
  func.func @transform_2(%arg0: i32, %arg1: i32, %arg2: i32) -> (i32, i32) {
    %c0_i32 = arith.constant 0 : i32
    %c0_i32_0 = arith.constant 0 : i32
    return %arg0, %c0_i32 : i32, i32
  }
  func.func @transform_3(%arg0: i32, %arg1: i32, %arg2: i32) -> (i32, i32) {
    %c0_i32 = arith.constant 0 : i32
    %c0_i32_0 = arith.constant 0 : i32
    return %arg0, %c0_i32 : i32, i32
  }
  func.func @transform_4(%arg0: i32, %arg1: i32, %arg2: i32) -> (i32, i32) {
    %c0_i32 = arith.constant 0 : i32
    %c0_i32_0 = arith.constant 0 : i32
    return %arg0, %c0_i32 : i32, i32
  }
  func.func @transform_5(%arg0: i32, %arg1: i32, %arg2: i32) -> (i32, i32) {
    %c0_i32 = arith.constant 0 : i32
    %c0_i32_0 = arith.constant 0 : i32
    return %c0_i32, %arg2 : i32, i32
  }
  func.func @transform_6(%arg0: i32, %arg1: i32, %arg2: i32) -> (i32, i32) {
    %c0_i32 = arith.constant 0 : i32
    %c0_i32_0 = arith.constant 0 : i32
    %c0_i32_1 = arith.constant 0 : i32
    return %c0_i32, %c0_i32_0 : i32, i32
  }
  func.func @transform_7(%arg0: i32, %arg1: i32, %arg2: i32) -> (i32, i32) {
    %c0_i32 = arith.constant 0 : i32
    %c0_i32_0 = arith.constant 0 : i32
    return %arg0, %c0_i32 : i32, i32
  }
}

</mosaic_0001>

<llo_original>
// kernel: tpu_custom_call.1
$region0: #{tpu_custom_call.1}
  #allocation0 [shape = 'u32[]', space=smem, size = 0x4, offset = 0x4, fixed_abs, tag = 'smem constant byte address 0x4 - core index']
  #allocation1 [shape = 'u32[72,128]{1,0:T(1,128)}', space=vmem, size = 0x9000, scoped, tag = 'internal scratch']
  #allocation2 [shape = 'bf16[8,32]{1,0:T(8,128)(2,1)}', space=vmem, size = 0x800, scoped, tag = 'scratch operand']
  #allocation3 [shape = 'f32[2,8,128]{2,1,0:T(8,128)}', space=vmem, size = 0x2000, scoped, tag = 'scratch operand']
  #allocation4 [shape = 'f32[8,3]{1,0:T(8,128)}', space=vmem, size = 0x1000, scoped, tag = 'scratch operand']
  #allocation5 [shape = 'f32[8,3]{1,0:T(8,128)}', space=vmem, size = 0x1000, scoped, tag = 'scratch operand']
  #allocation6 [shape = 'f32[8,1]{1,0:T(8,128)}', space=vmem, size = 0x1000, scoped, tag = 'scratch operand']
  #allocation7 [shape = 'f32[8,1]{1,0:T(8,128)}', space=vmem, size = 0x1000, scoped, tag = 'scratch operand']
  #allocation8 [shape = 'f32[8,3]{1,0:T(8,128)}', space=vmem, size = 0x1000, scoped, tag = 'scratch operand']
  #allocation9 [shape = 'f32[8,3]{1,0:T(8,128)}', space=vmem, size = 0x1000, scoped, tag = 'scratch operand']
  #allocation10 [shape = 'f32[8,1]{1,0:T(8,128)}', space=vmem, size = 0x1000, scoped, tag = 'scratch operand']
  #allocation11 [shape = 'f32[8,1]{1,0:T(8,128)}', space=vmem, size = 0x1000, scoped, tag = 'scratch operand']
  #allocation12 [shape = 'f32[8,1]{1,0:T(8,128)}', space=vmem, size = 0x1000, scoped, tag = 'scratch operand']
  #allocation13 [shape = 'f32[8,3]{1,0:T(8,128)}', space=vmem, size = 0x1000, scoped, tag = 'scratch operand']
  #allocation14 [shape = 'f32[8,3]{1,0:T(8,128)}', space=vmem, size = 0x1000, scoped, tag = 'scratch operand']
  #allocation15 [shape = 'f32[8,3]{1,0:T(8,128)}', space=vmem, size = 0x1000, scoped, tag = 'scratch operand']
  #allocation16 [shape = 'f32[8,1]{1,0:T(8,128)}', space=vmem, size = 0x1000, scoped, tag = 'scratch operand']
  #allocation17 [shape = 'f32[8,1]{1,0:T(8,128)}', space=vmem, size = 0x1000, scoped, tag = 'scratch operand']
  %s0 = inlined_call_operand.vmem [shape: f32[16,32], index: 0, kind: input, shape index: {}]
  %s1 = inlined_call_operand.vmem [shape: bf16[32,256], index: 1, kind: input, shape index: {}]
  %s2 = inlined_call_operand.vmem [shape: s32[16,1], index: 2, kind: input, shape index: {}]
  %s3 = inlined_call_operand.vmem [shape: s32[16,1], index: 3, kind: input, shape index: {}]
  %s4 = inlined_call_operand.vmem [shape: s32[16,1], index: 4, kind: input, shape index: {}]
  %s5 = inlined_call_operand.vmem [shape: s32[1,256], index: 5, kind: input, shape index: {}]
  %s6 = inlined_call_operand.vmem [shape: f32[1,3], index: 6, kind: input, shape index: {}]
  %s7 = inlined_call_operand.hbm [shape: f32[16,128], index: 7, kind: output, shape index: {}]
  %s8 = sld [smem:[#allocation0]]
  $region122: #{tpu_custom_call.1} parent=0
    _
  %s10 = ssub.s32 1, %s8
  %s11 = scalar_select 0, %s10, %s8
  $region1: #{tpu_custom_call.1} parent=0
    #allocation18 [shape = 'u8[16384]{0}', space=vmem, size = 0x4000, scoped, tag = 'input window, operand 1']
    #allocation19 [shape = 'u8[8192]{0}', space=vmem, size = 0x2000, scoped, tag = 'output window, operand 0']
    #allocation20 [shape = 's32[2]{0}', space=sflag, size = 0x8, scoped, tag = 'scoped memory for tpu_custom_call.1']
    %12 = vsyncpa [#allocation20], 0
    %s13 = scalar_lea.sflag [#allocation20], 1
    %14 = vsyncpa %s13, 0
    loop: start=0, step=1, limit=10
    $region2: #{tpu_custom_call.1} parent=1 // loop_pre_header
      _
    $region3: #{tpu_custom_call.1} parent=1 // loop_header
      %s16 = sphi 0, %s20
      %p17 = scmp.ge.s32.totalorder %s16, 10
      %s23 = sphi 0, %s42
      %s24 = sphi 0, %s38
      %s25 = sphi 0, %s34
      %s26 = sphi 0, %s23
      %s27 = sphi 0, %s24
      %s28 = sphi 0, %s25
      %s29 = sphi 0, %s26
      %s30 = sphi 0, %s27
      %s31 = sphi 0, %s28
      %s45 = sphi 0, %s47
      %s48 = sphi 0, %s45
      %s49 = sphi 0, %s48
      %s65 = sphi 0, %s49
      %s77 = sphi 0, %s79
      %s80 = sphi 0, %s77
      %s81 = sphi 0, %s80
      %s97 = sphi 0, %s81
      %s103 = sphi 0, %s105
      %s106 = sphi 0, %s103
      %s107 = sphi 0, %s106
      %s123 = sphi 0, %s107
      %s129 = sphi 0, %s131
      %s132 = sphi 0, %s129
      %s133 = sphi 0, %s132
      %s149 = sphi 0, %s133
      %s155 = sphi 0, %s157
      %s158 = sphi 0, %s155
      %s159 = sphi 0, %s158
      %s175 = sphi 0, %s159
      %s181 = sphi 0, %s183
      %s184 = sphi 0, %s181
      %s185 = sphi 0, %s184
      %s201 = sphi 0, %s185
      %s205 = sphi 0, %s205
      %s207 = sphi 0, %s205
      %s208 = sphi 0, %s207
      %s222 = sphi 0, %s208
      %s228 = sphi 0, %s230
      %s231 = sphi 0, %s228
      %s232 = sphi 0, %s231
      %s248 = sphi 0, %s232
    $region4: #{tpu_custom_call.1} parent=1 // loop_header_branch
      %19 = sbr.rel (%p17) target = $region8
    $region5: #{tpu_custom_call.1} parent=1 // loop_body
      %s21 = ssub.s32 %s16, 1
      %s22 = ssub.s32 %s16, 2
      %s32 = sadd.s32 1, %s25
      %p33 = scmp.ge.s32.totalorder %s32, 2
      %s34 = scalar_select %p33, 0, %s32
      %s35 = sadd.s32 1, %s24
      %s36 = scalar_select %p33, %s35, %s24
      %p37 = scmp.ge.s32.totalorder %s36, 2
      %s38 = scalar_select %p37, 0, %s36
      %s39 = sadd.s32 1, %s23
      %s40 = scalar_select %p37, %s39, %s23
      %p41 = scmp.ge.s32.totalorder %s40, 2
      %s42 = scalar_select %p41, 0, %s40
      %s43 = ssub.s32 %s23, %s42
      %p44 = scmp.eq.s32.totalorder %s43, 0
      %s46 = sadd.s32 %s45, 1
      %s47 = scalar_select %p44, %s45, %s46
      %p50 = pneg %p44
      %p51 = scmp.eq.s32.totalorder %s16, 7
      %p52 = por %p50, %p51
      %p53 = scmp.ne.s32.totalorder %s45, %s48
      %p54 = scmp.eq.s32.totalorder %s16, 0
      %p55 = por %p53, %p54
      %p56 = scmp.ne.s32.totalorder %s45, %s48
      %p57 = scmp.eq.s32.totalorder %s21, 7
      %p58 = por %p56, %p57
      %p59 = scmp.ne.s32.totalorder %s48, %s49
      %p60 = scmp.eq.s32.totalorder %s21, 0
      %p61 = por %p59, %p60
      %p62 = scmp.ne.s32.totalorder %s48, %s49
      %p63 = scmp.eq.s32.totalorder %s22, 7
      %p64 = por %p62, %p63
      %p66 = scmp.ne.s32.totalorder %s49, %s65
      %p67 = scmp.eq.s32.totalorder %s22, 0
      %p68 = por %p66, %p67
      %s69 = ssub.s32 1, %s24
      %s70 = smul.u32 %s25, %s69
      %s71 = sadd.s32 %s70, %s24
      %s72 = ssub.s32 1, %s38
      %s73 = smul.u32 %s34, %s72
      %s74 = sadd.s32 %s73, %s38
      %s75 = ssub.s32 %s71, %s74
      %p76 = scmp.eq.s32.totalorder %s75, 0
      %s78 = sadd.s32 %s77, 1
      %s79 = scalar_select %p76, %s77, %s78
      %p82 = pneg %p76
      %p83 = scmp.eq.s32.totalorder %s16, 7
      %p84 = por %p82, %p83
      %p85 = scmp.ne.s32.totalorder %s77, %s80
      %p86 = scmp.eq.s32.totalorder %s16, 0
      %p87 = por %p85, %p86
      %p88 = scmp.ne.s32.totalorder %s77, %s80
      %p89 = scmp.eq.s32.totalorder %s21, 7
      %p90 = por %p88, %p89
      %p91 = scmp.ne.s32.totalorder %s80, %s81
      %p92 = scmp.eq.s32.totalorder %s21, 0
      %p93 = por %p91, %p92
      %p94 = scmp.ne.s32.totalorder %s80, %s81
      %p95 = scmp.eq.s32.totalorder %s22, 7
      %p96 = por %p94, %p95
      %p98 = scmp.ne.s32.totalorder %s81, %s97
      %p99 = scmp.eq.s32.totalorder %s22, 0
      %p100 = por %p98, %p99
      %s101 = ssub.s32 %s23, %s42
      %p102 = scmp.eq.s32.totalorder %s101, 0
      %s104 = sadd.s32 %s103, 1
      %s105 = scalar_select %p102, %s103, %s104
      %p108 = pneg %p102
      %p109 = scmp.eq.s32.totalorder %s16, 7
      %p110 = por %p108, %p109
      %p111 = scmp.ne.s32.totalorder %s103, %s106
      %p112 = scmp.eq.s32.totalorder %s16, 0
      %p113 = por %p111, %p112
      %p114 = scmp.ne.s32.totalorder %s103, %s106
      %p115 = scmp.eq.s32.totalorder %s21, 7
      %p116 = por %p114, %p115
      %p117 = scmp.ne.s32.totalorder %s106, %s107
      %p118 = scmp.eq.s32.totalorder %s21, 0
      %p119 = por %p117, %p118
      %p120 = scmp.ne.s32.totalorder %s106, %s107
      %p121 = scmp.eq.s32.totalorder %s22, 7
      %p122 = por %p120, %p121
      %p124 = scmp.ne.s32.totalorder %s107, %s123
      %p125 = scmp.eq.s32.totalorder %s22, 0
      %p126 = por %p124, %p125
      %s127 = ssub.s32 %s23, %s42
      %p128 = scmp.eq.s32.totalorder %s127, 0
      %s130 = sadd.s32 %s129, 1
      %s131 = scalar_select %p128, %s129, %s130
      %p134 = pneg %p128
      %p135 = scmp.eq.s32.totalorder %s16, 7
      %p136 = por %p134, %p135
      %p137 = scmp.ne.s32.totalorder %s129, %s132
      %p138 = scmp.eq.s32.totalorder %s16, 0
      %p139 = por %p137, %p138
      %p140 = scmp.ne.s32.totalorder %s129, %s132
      %p141 = scmp.eq.s32.totalorder %s21, 7
      %p142 = por %p140, %p141
      %p143 = scmp.ne.s32.totalorder %s132, %s133
      %p144 = scmp.eq.s32.totalorder %s21, 0
      %p145 = por %p143, %p144
      %p146 = scmp.ne.s32.totalorder %s132, %s133
      %p147 = scmp.eq.s32.totalorder %s22, 7
      %p148 = por %p146, %p147
      %p150 = scmp.ne.s32.totalorder %s133, %s149
      %p151 = scmp.eq.s32.totalorder %s22, 0
      %p152 = por %p150, %p151
      %s153 = ssub.s32 %s23, %s42
      %p154 = scmp.eq.s32.totalorder %s153, 0
      %s156 = sadd.s32 %s155, 1
      %s157 = scalar_select %p154, %s155, %s156
      %p160 = pneg %p154
      %p161 = scmp.eq.s32.totalorder %s16, 7
      %p162 = por %p160, %p161
      %p163 = scmp.ne.s32.totalorder %s155, %s158
      %p164 = scmp.eq.s32.totalorder %s16, 0
      %p165 = por %p163, %p164
      %p166 = scmp.ne.s32.totalorder %s155, %s158
      %p167 = scmp.eq.s32.totalorder %s21, 7
      %p168 = por %p166, %p167
      %p169 = scmp.ne.s32.totalorder %s158, %s159
      %p170 = scmp.eq.s32.totalorder %s21, 0
      %p171 = por %p169, %p170
      %p172 = scmp.ne.s32.totalorder %s158, %s159
      %p173 = scmp.eq.s32.totalorder %s22, 7
      %p174 = por %p172, %p173
      %p176 = scmp.ne.s32.totalorder %s159, %s175
      %p177 = scmp.eq.s32.totalorder %s22, 0
      %p178 = por %p176, %p177
      %s179 = ssub.s32 %s25, %s34
      %p180 = scmp.eq.s32.totalorder %s179, 0
      %s182 = sadd.s32 %s181, 1
      %s183 = scalar_select %p180, %s181, %s182
      %p186 = pneg %p180
      %p187 = scmp.eq.s32.totalorder %s16, 7
      %p188 = por %p186, %p187
      %p189 = scmp.ne.s32.totalorder %s181, %s184
      %p190 = scmp.eq.s32.totalorder %s16, 0
      %p191 = por %p189, %p190
      %p192 = scmp.ne.s32.totalorder %s181, %s184
      %p193 = scmp.eq.s32.totalorder %s21, 7
      %p194 = por %p192, %p193
      %p195 = scmp.ne.s32.totalorder %s184, %s185
      %p196 = scmp.eq.s32.totalorder %s21, 0
      %p197 = por %p195, %p196
      %p198 = scmp.ne.s32.totalorder %s184, %s185
      %p199 = scmp.eq.s32.totalorder %s22, 7
      %p200 = por %p198, %p199
      %p202 = scmp.ne.s32.totalorder %s185, %s201
      %p203 = scmp.eq.s32.totalorder %s22, 0
      %p204 = por %p202, %p203
      %s206 = sadd.s32 %s205, 1
      %p209 = scmp.eq.s32.totalorder %s16, 7
      %p210 = scmp.ne.s32.totalorder %s205, %s207
      %p211 = scmp.eq.s32.totalorder %s16, 0
      %p212 = por %p210, %p211
      %p213 = scmp.ne.s32.totalorder %s205, %s207
      %p214 = scmp.eq.s32.totalorder %s21, 7
      %p215 = por %p213, %p214
      %p216 = scmp.ne.s32.totalorder %s207, %s208
      %p217 = scmp.eq.s32.totalorder %s21, 0
      %p218 = por %p216, %p217
      %p219 = scmp.ne.s32.totalorder %s207, %s208
      %p220 = scmp.eq.s32.totalorder %s22, 7
      %p221 = por %p219, %p220
      %p223 = scmp.ne.s32.totalorder %s208, %s222
      %p224 = scmp.eq.s32.totalorder %s22, 0
      %p225 = por %p223, %p224
      %s226 = ssub.s32 %s23, %s42
      %p227 = scmp.eq.s32.totalorder %s226, 0
      %s229 = sadd.s32 %s228, 1
      %s230 = scalar_select %p227, %s228, %s229
      %p233 = pneg %p227
      %p234 = scmp.eq.s32.totalorder %s16, 7
      %p235 = por %p233, %p234
      %p236 = scmp.ne.s32.totalorder %s228, %s231
      %p237 = scmp.eq.s32.totalorder %s16, 0
      %p238 = por %p236, %p237
      %p239 = scmp.ne.s32.totalorder %s228, %s231
      %p240 = scmp.eq.s32.totalorder %s21, 7
      %p241 = por %p239, %p240
      %p242 = scmp.ne.s32.totalorder %s231, %s232
      %p243 = scmp.eq.s32.totalorder %s21, 0
      %p244 = por %p242, %p243
      %p245 = scmp.ne.s32.totalorder %s231, %s232
      %p246 = scmp.eq.s32.totalorder %s22, 7
      %p247 = por %p245, %p246
      %p249 = scmp.ne.s32.totalorder %s232, %s248
      %p250 = scmp.eq.s32.totalorder %s22, 0
      %p251 = por %p249, %p250
      %p252 = scmp.le.s32.totalorder 1, %s16
      %p253 = scmp.lt.s32.totalorder %s16, 9
      %p254 = pnand %p252, %p253
      %p255 = pneg %p254
      // Predicated region
      $region9: #{tpu_custom_call.1} parent=5 // pred_check
        _
      $region10: #{tpu_custom_call.1} parent=5 // pred_check_branch
        %257 = sbr.rel (%p254) target = $region12
      $region11: #{tpu_custom_call.1} parent=5 // pred_region
        %s258 = ssub.s32 %s16, 1
        // Predicated region
        $region13: #{tpu_custom_call.1} parent=11 // pred_check
          %p259 = pneg %p218
        $region14: #{tpu_custom_call.1} parent=11 // pred_check_branch
          %261 = sbr.rel (%p259) target = $region16
        $region15: #{tpu_custom_call.1} parent=11 // pred_region
          _
        $region16: #{tpu_custom_call.1} parent=11 // pred_fallthru
          _
      $region12: #{tpu_custom_call.1} parent=5 // pred_fallthru
        _
      %p262 = scmp.lt.s32.totalorder %s16, 8
      // Predicated region
      $region17: #{tpu_custom_call.1} parent=5 // pred_check
        %p263 = pneg %p262
      $region18: #{tpu_custom_call.1} parent=5 // pred_check_branch
        %265 = sbr.rel (%p263) target = $region20
      $region19: #{tpu_custom_call.1} parent=5 // pred_region
        // Predicated region
        $region21: #{tpu_custom_call.1} parent=19 // pred_check
          %p266 = pneg %p55
        $region22: #{tpu_custom_call.1} parent=19 // pred_check_branch
          %268 = sbr.rel (%p266) target = $region24
        $region23: #{tpu_custom_call.1} parent=19 // pred_region
          %p269 = scmp.lt.s32.totalorder %s23, 1
          %s270 = scalar_select %p269, %s23, 1
          %s271 = smul.addr %s270, 8
          %s272 = scalar_lea.vmem %s0, %s271
        $region24: #{tpu_custom_call.1} parent=19 // pred_fallthru
          _
        // Predicated region
        $region25: #{tpu_custom_call.1} parent=19 // pred_check
          %p273 = pneg %p87
        $region26: #{tpu_custom_call.1} parent=19 // pred_check_branch
          %275 = sbr.rel (%p273) target = $region28
        $region27: #{tpu_custom_call.1} parent=19 // pred_region
          %s276 = sand.u32 %s77, 1
          %s277 = sand.u32 %s77, 1
          %s278 = smul.addr %s277, 16
          %s279 = scalar_lea.vmem [#allocation18], %s278
          %s280 = ssub.s32 1, %s24
          %s281 = smul.u32 %s25, %s280
          %s282 = sadd.s32 %s281, %s24
          %s283 = smul.addr %s282, 4
          %s284 = scalar_lea.vmem %s1, %s283
          // Predicated region
          $region29: #{tpu_custom_call.1} parent=27 // pred_check
            _
          $region30: #{tpu_custom_call.1} parent=27 // pred_check_branch
            %286 = sbr.rel (0) target = $region32
          $region31: #{tpu_custom_call.1} parent=27 // pred_region
            // Predicated region
            $region33: #{tpu_custom_call.1} parent=31 // pred_check
              _
            $region34: #{tpu_custom_call.1} parent=31 // pred_check_branch
              %288 = sbr.rel target = $region36
            $region35: #{tpu_custom_call.1} parent=31 // pred_region
              // Predicated region
              $region48: #{tpu_custom_call.1} parent=35 // pred_check
                _
              $region49: #{tpu_custom_call.1} parent=35 // pred_check_branch
                %310 = sbr.rel (0) target = $region51
              $region50: #{tpu_custom_call.1} parent=35 // pred_region
                loop: start=0, step=1, limit=1
                $region52: #{tpu_custom_call.1} parent=50 // loop_pre_header
                  _
                $region53: #{tpu_custom_call.1} parent=50 // loop_header
                  %s312 = sphi 0, %s316
                  %p313 = scmp.ge.s32.totalorder %s312, 1
                  %s317 = sphi %s284, %s284
                  %s318 = sphi %s279, %s279
                $region54: #{tpu_custom_call.1} parent=50 // loop_header_branch
                  %315 = sbr.rel (%p313) target = $region58
                $region55: #{tpu_custom_call.1} parent=50 // loop_body
                  _
                $region56: #{tpu_custom_call.1} parent=50 // loop_footer
                  %s316 = sadd.s32 1, %s312
                $region57: #{tpu_custom_call.1} parent=50 // loop_footer_branch
                  %311 = sbr.rel target = $region53
                $region58: #{tpu_custom_call.1} parent=50 // loop_exit
                  _
                %s320 = ssub.s32 16, 1
                loop: start=0, step=1, limit=1
                $region59: #{tpu_custom_call.1} parent=50 // loop_pre_header
                  _
                $region60: #{tpu_custom_call.1} parent=50 // loop_header
                  %s322 = sphi 0, %s326
                  %p323 = scmp.ge.s32.totalorder %s322, 1
                  %s327 = sphi %s284, %s284
                  %s328 = sphi %s279, %s279
                $region61: #{tpu_custom_call.1} parent=50 // loop_header_branch
                  %325 = sbr.rel (%p323) target = $region65
                $region62: #{tpu_custom_call.1} parent=50 // loop_body
                  %v329 = vld [vmem:[%s327] sm:%s320]
                  %330 = vst [vmem:[%s328] sm:%s320] %v329
                  %v331 = vld [vmem:[%s327 + $0x8] sm:%s320]
                  %332 = vst [vmem:[%s328 + $0x4] sm:%s320] %v331
                  %v333 = vld [vmem:[%s327 + $0x10] sm:%s320]
                  %334 = vst [vmem:[%s328 + $0x8] sm:%s320] %v333
                  %v335 = vld [vmem:[%s327 + $0x18] sm:%s320]
                  %336 = vst [vmem:[%s328 + $0xc] sm:%s320] %v335
                $region63: #{tpu_custom_call.1} parent=50 // loop_footer
                  %s326 = sadd.s32 1, %s322
                $region64: #{tpu_custom_call.1} parent=50 // loop_footer_branch
                  %321 = sbr.rel target = $region60
                $region65: #{tpu_custom_call.1} parent=50 // loop_exit
                  _
              $region51: #{tpu_custom_call.1} parent=35 // pred_fallthru
                _
            $region36: #{tpu_custom_call.1} parent=31 // pred_fallthru
              _
            // Predicated region
            $region37: #{tpu_custom_call.1} parent=31 // pred_check
              _
            $region38: #{tpu_custom_call.1} parent=31 // pred_check_branch
              %290 = sbr.rel (0) target = $region40
            $region39: #{tpu_custom_call.1} parent=31 // pred_region
              %s292 = ssub.s32 16, 1
              loop: start=0, step=1, limit=1
              $region41: #{tpu_custom_call.1} parent=39 // loop_pre_header
                _
              $region42: #{tpu_custom_call.1} parent=39 // loop_header
                %s294 = sphi 0, %s298
                %p295 = scmp.ge.s32.totalorder %s294, 1
                %s299 = sphi %s284, %s284
                %s300 = sphi %s279, %s279
              $region43: #{tpu_custom_call.1} parent=39 // loop_header_branch
                %297 = sbr.rel (%p295) target = $region47
              $region44: #{tpu_custom_call.1} parent=39 // loop_body
                %v301 = vld [vmem:[%s299] sm:%s292]
                %302 = vst [vmem:[%s300] sm:%s292] %v301
                %v303 = vld [vmem:[%s299 + $0x8] sm:%s292]
                %304 = vst [vmem:[%s300 + $0x4] sm:%s292] %v303
                %v305 = vld [vmem:[%s299 + $0x10] sm:%s292]
                %306 = vst [vmem:[%s300 + $0x8] sm:%s292] %v305
                %v307 = vld [vmem:[%s299 + $0x18] sm:%s292]
                %308 = vst [vmem:[%s300 + $0xc] sm:%s292] %v307
              $region45: #{tpu_custom_call.1} parent=39 // loop_footer
                %s298 = sadd.s32 1, %s294
              $region46: #{tpu_custom_call.1} parent=39 // loop_footer_branch
                %293 = sbr.rel target = $region42
              $region47: #{tpu_custom_call.1} parent=39 // loop_exit
                _
            $region40: #{tpu_custom_call.1} parent=31 // pred_fallthru
              _
          $region32: #{tpu_custom_call.1} parent=27 // pred_fallthru
            _
          %337 = vnop
        $region28: #{tpu_custom_call.1} parent=19 // pred_fallthru
          _
        // Predicated region
        $region66: #{tpu_custom_call.1} parent=19 // pred_check
          %p338 = pneg %p113
        $region67: #{tpu_custom_call.1} parent=19 // pred_check_branch
          %340 = sbr.rel (%p338) target = $region69
        $region68: #{tpu_custom_call.1} parent=19 // pred_region
          %p341 = scmp.lt.s32.totalorder %s23, 1
          %s342 = scalar_select %p341, %s23, 1
          %s343 = smul.addr %s342, 8
          %s344 = scalar_lea.vmem %s2, %s343
        $region69: #{tpu_custom_call.1} parent=19 // pred_fallthru
          _
        // Predicated region
        $region70: #{tpu_custom_call.1} parent=19 // pred_check
          %p345 = pneg %p139
        $region71: #{tpu_custom_call.1} parent=19 // pred_check_branch
          %347 = sbr.rel (%p345) target = $region73
        $region72: #{tpu_custom_call.1} parent=19 // pred_region
          %p348 = scmp.lt.s32.totalorder %s23, 1
          %s349 = scalar_select %p348, %s23, 1
          %s350 = smul.addr %s349, 8
          %s351 = scalar_lea.vmem %s3, %s350
        $region73: #{tpu_custom_call.1} parent=19 // pred_fallthru
          _
        // Predicated region
        $region74: #{tpu_custom_call.1} parent=19 // pred_check
          %p352 = pneg %p165
        $region75: #{tpu_custom_call.1} parent=19 // pred_check_branch
          %354 = sbr.rel (%p352) target = $region77
        $region76: #{tpu_custom_call.1} parent=19 // pred_region
          %p355 = scmp.lt.s32.totalorder %s23, 1
          %s356 = scalar_select %p355, %s23, 1
          %s357 = smul.addr %s356, 8
          %s358 = scalar_lea.vmem %s4, %s357
        $region77: #{tpu_custom_call.1} parent=19 // pred_fallthru
          _
        // Predicated region
        $region78: #{tpu_custom_call.1} parent=19 // pred_check
          %p359 = pneg %p191
        $region79: #{tpu_custom_call.1} parent=19 // pred_check_branch
          %361 = sbr.rel (%p359) target = $region81
        $region80: #{tpu_custom_call.1} parent=19 // pred_region
          %p362 = scmp.lt.s32.totalorder %s25, 1
          %s363 = scalar_select %p362, %s25, 1
          %s364 = scalar_lea.vmem %s5, %s363
        $region81: #{tpu_custom_call.1} parent=19 // pred_fallthru
          _
      $region20: #{tpu_custom_call.1} parent=5 // pred_fallthru
        _
      %p365 = scmp.le.s32.totalorder 1, %s16
      %p366 = scmp.lt.s32.totalorder %s16, 9
      %p367 = pnand %p365, %p366
      %p368 = pneg %p367
      // Predicated region
      $region82: #{tpu_custom_call.1} parent=5 // pred_check
        _
      $region83: #{tpu_custom_call.1} parent=5 // pred_check_branch
        %370 = sbr.rel (%p367) target = $region85
      $region84: #{tpu_custom_call.1} parent=5 // pred_region
        %s371 = ssub.s32 %s16, 1
        %s372 = sand.u32 %s80, 1
        %s373 = sand.u32 %s80, 1
        %s374 = smul.addr %s373, 16
        %s375 = scalar_lea.vmem [#allocation18], %s374
        // Predicated region
        $region86: #{tpu_custom_call.1} parent=84 // pred_check
          %p376 = pneg %p93
        $region87: #{tpu_custom_call.1} parent=84 // pred_check_branch
          %378 = sbr.rel (%p376) target = $region89
        $region88: #{tpu_custom_call.1} parent=84 // pred_region
          _
        $region89: #{tpu_custom_call.1} parent=84 // pred_fallthru
          _
        %p379 = scmp.lt.s32.totalorder %s26, 1
        %s380 = scalar_select %p379, %s26, 1
        %s381 = smul.addr %s380, 8
        %s382 = scalar_lea.vmem %s0, %s381
        %p383 = pneg %p61
        %p384 = pneg %p58
        %s385 = sand.u32 %s80, 1
        %s386 = sand.u32 %s80, 1
        %s387 = smul.addr %s386, 16
        %s388 = scalar_lea.vmem [#allocation18], %s387
        %p389 = pneg %p93
        %p390 = pneg %p90
        %p391 = scmp.lt.s32.totalorder %s26, 1
        %s392 = scalar_select %p391, %s26, 1
        %s393 = smul.addr %s392, 8
        %s394 = scalar_lea.vmem %s2, %s393
        %p395 = pneg %p119
        %p396 = pneg %p116
        %p397 = scmp.lt.s32.totalorder %s26, 1
        %s398 = scalar_select %p397, %s26, 1
        %s399 = smul.addr %s398, 8
        %s400 = scalar_lea.vmem %s3, %s399
        %p401 = pneg %p145
        %p402 = pneg %p142
        %p403 = scmp.lt.s32.totalorder %s26, 1
        %s404 = scalar_select %p403, %s26, 1
        %s405 = smul.addr %s404, 8
        %s406 = scalar_lea.vmem %s4, %s405
        %p407 = pneg %p171
        %p408 = pneg %p168
        %p409 = scmp.lt.s32.totalorder %s28, 1
        %s410 = scalar_select %p409, %s28, 1
        %s411 = scalar_lea.vmem %s5, %s410
        %p412 = pneg %p197
        %p413 = pneg %p194
        %p414 = pneg %p218
        %p415 = pneg %p215
        %p416 = pneg %p244
        %p417 = pneg %p241
        %s418 = sand.u32 %s231, 1
        %s419 = scalar_lea.sflag [#allocation20], %s418
        %s420 = sand.u32 %s231, 1
        %s421 = smul.addr %s420, 8
        %s422 = scalar_lea.vmem [#allocation19], %s421
        %p423 = scmp.lt.s32.totalorder %s26, 1
        %s424 = scalar_select %p423, %s26, 1
        %s425 = smul.addr %s424, 8
        %s426 = scalar_lea.vmem %s0, %s425
        %s427 = ssub.s32 1, %s27
        %s428 = smul.u32 %s28, %s427
        %s429 = sadd.s32 %s428, %s27
        %p430 = scmp.lt.s32.totalorder %s26, 1
        %s431 = scalar_select %p430, %s26, 1
        %s432 = smul.addr %s431, 8
        %s433 = scalar_lea.vmem %s2, %s432
        %p434 = scmp.lt.s32.totalorder %s26, 1
        %s435 = scalar_select %p434, %s26, 1
        %s436 = smul.addr %s435, 8
        %s437 = scalar_lea.vmem %s3, %s436
        %p438 = scmp.lt.s32.totalorder %s26, 1
        %s439 = scalar_select %p438, %s26, 1
        %s440 = smul.addr %s439, 8
        %s441 = scalar_lea.vmem %s4, %s440
        %p442 = scmp.lt.s32.totalorder %s28, 1
        %s443 = scalar_select %p442, %s28, 1
        %s444 = scalar_lea.vmem %s5, %s443
        %v446 = vld [vmem:[%s444] sm:$0x1]
        %v447 = vld [vmem:[%s433] sm:$0xff]
        %v448 = vld [vmem:[%s437] sm:$0xff]
        %s449 = smul.u32 %s28, 128
        %v450 = vlaneseq
        %v451 = vand.u32 %v450, 127
        %v452 = vstv %s449
        %v453 = vadd.s32 %v452, %v451
        %vm454 = vcmp.lt.s32.totalorder %v453, 256
        %455 = vset.pattern.permute.xlu0 0
        %456 = vperm.xlu0 %455, %v447
        %v457 = vpop.permute.xlu0 %456
        %vm458 = vcmp.eq.s32.totalorder %v453, %v457
        %vm459 = vmxor %vm458, 1
        %v460 = vlaneseq
        %v461 = vshrl.u32 %v460, 7
        %v462 = vperm.slane %v446, 0
        %vm463 = vcmp.eq.s32.totalorder %v461, %v462
        %v464 = vsel %vm463, 1, 0
        %v465 = vcvt.s32.f32 %v464
        %466 = vset.pattern.permute.xlu0 0
        %467 = vperm.xlu0 %466, %v448
        %v468 = vpop.permute.xlu0 %467
        %vm469 = vcmp.ne.s32.totalorder %v462, %v468
        %v470 = vsel %vm454, 1, 0
        %vm471 = vcmp.eq.s32.totalorder %v470, 1
        %vm472 = vmand %vm469, %vm471
        %p473 = scmp.eq.s32.totalorder %s27, 0
        %p474 = scmp.eq.s32.totalorder %s28, 0
        %p475 = pnand %p473, %p474
        %p476 = pneg %p475
        // Predicated region
        $region90: #{tpu_custom_call.1} parent=84 // pred_check
          _
        $region91: #{tpu_custom_call.1} parent=84 // pred_check_branch
          %478 = sbr.rel (%p475) target = $region93
        $region92: #{tpu_custom_call.1} parent=84 // pred_region
          %v479 = vld [vmem:[%s426] sm:$0xff]
          %v480 = vmul.f32 %v479, %v479
          %vm481 = vcmask 261120
          %v482 = vsel %vm481, %v480, 0.0
          %483 = vadd.xlane.f32.xlu0 %v482
          %v484 = vpop.xlane.xlu0 %483
          %v485 = vrsqrt.pop %v484
          %v486 = vmul.f32 %v485, %v484
          %v487 = vmul.f32 %v486, %v485
          %v488 = vmul.f32 0.5, %v487
          %v489 = vsub.f32 1.5, %v488
          %v490 = vmul.f32 %v485, %v489
          %v491 = vmul.f32 %v484, %v490
          %vm492 = vcmp.eq.f32.partialorder %v484, inf
          %v493 = vsel %vm492, %v484, %v491
          %vm494 = vcmp.eq.f32.partialorder %v484, 0.0
          %v495 = vand.u32 %v484, 2147483648
          %v496 = vsel %vm494, %v495, %v493
          %v497 = vmax.f32 %v496, 1e-12
          %v498 = vrcp.pop %v497
          %v499 = vmul.f32 %v497, %v498
          %v500 = vsub.f32 1.0, %v499
          %v501 = vmul.f32 %v498, %v500
          %v502 = vadd.f32 %v498, %v501
          %vm503 = vweird.f32 %v497
          %vm504 = vweird.f32 %v498
          %vm505 = vmor %vm503, %vm504
          %v506 = vsel %vm505, %v498, %v502
          %v507 = vand.u32 2147483647, %v497
          %vm508 = vcmp.eq.f32.partialorder %v507, 8.507059e+37
          %v509 = vand.u32 %v497, 2147483648
          %v510 = vor.u32 1.1754944e-38, %v509
          %v511 = vsel %vm508, %v510, %v506
          %v512 = vmul.f32 %v479, %v511
          %v513 = vpack.c.bf16 %v512, %v512
          %vm514 = vcmask 257024
          %515 = vst.msk [vmem:[#allocation2] sm:$0xf] %vm514, %v513
          %vm516 = vcmask 23552
          %517 = vst.msk [vmem:[#allocation4] sm:$0xff] %vm516, -1e+30
          %518 = vst.msk [vmem:[#allocation5] sm:$0xff] %vm516, 0.0
          %vm519 = vcmask 7168
          %520 = vst.msk [vmem:[#allocation6] sm:$0xff] %vm519, -1e+30
          %521 = vst.msk [vmem:[#allocation7] sm:$0xff] %vm519, 0.0
          %522 = vst.msk [vmem:[#allocation13] sm:$0xff] %vm516, 0.0
          %523 = vst.msk [vmem:[#allocation14] sm:$0xff] %vm516, 0.0
          %524 = vst.msk [vmem:[#allocation15] sm:$0xff] %vm516, 0.0
          %525 = vst.msk [vmem:[#allocation16] sm:$0xff] %vm519, 0.0
          %526 = vst.msk [vmem:[#allocation17] sm:$0xff] %vm519, 0.0
        $region93: #{tpu_custom_call.1} parent=84 // pred_fallthru
          _
        // Predicated region
        $region94: #{tpu_custom_call.1} parent=84 // pred_check
          %p527 = pneg %p473
        $region95: #{tpu_custom_call.1} parent=84 // pred_check_branch
          %529 = sbr.rel (%p527) target = $region97
        $region96: #{tpu_custom_call.1} parent=84 // pred_region
          %v530 = vld [vmem:[%s375] sm:$0xf]
          %v531 = vld [vmem:[%s375 + $0x4] sm:$0xf]
          %v532 = vld [vmem:[%s375 + $0x8] sm:$0xf]
          %v533 = vld [vmem:[%s375 + $0xc] sm:$0xf]
          %v534 = vld [vmem:[#allocation2] sm:$0xf]
          %v539 = vunpack.c.l.b16 %v530
          %v540 = vunpack.c.l.b16 %v531
          %v541 = vunpack.c.l.b16 %v532
          %v542 = vunpack.c.l.b16 %v533
          %v543 = vpack.c.b16 %v540, %v539
          %v544 = vpack.c.b16 %v542, %v541
          %vm547 = vcmask 261120
          %v549 = vsel %vm547, %v534, 0
          %551 = vmatpush.bf16.msra.mxu0 0
          %552 = vmatpush.bf16.msra.mxu0 0
          %553 = vmatpush.bf16.msra.mxu0 0
          %554 = vmatpush.bf16.msra.mxu0 0
          %555 = vmatpush.bf16.msra.mxu0 0
          %556 = vmatpush.bf16.msra.mxu0 0
          %557 = vmatpush.bf16.msra.mxu0 %v544
          %558 = vmatpush.bf16.msra.mxu0 %v543
          %559 = vmatmul.bf16.gmra.mxu0 %v549
          %v560 = vpop.f32.mrf.mxu0
          %v561 = vadd.f32 0.0, %v560
          %v562 = vpop.f32.mrf.mxu0
          %563 = vdwg.mxu0
          %s564 = smul.u32 %s28, 8
          %s565 = scalar_lea.vmem [#allocation3], %s564
          %566 = vst [vmem:[%s565] sm:$0xff] %v561
          %v567 = vmul.f32 %v561, 20.0
          %v568 = vsel %vm459, %v561, -1e+30
          %vm569 = vcmp.eq.s32.totalorder %v446, 0
          %v570 = vsel %vm569, 1, 0
          %v571 = vperm.slane %v570, 0
          %vm572 = vcmp.eq.s32.totalorder %v571, 1
          %v573 = vsel %vm572, %v568, -1e+30
          %574 = vmax.xlane.f32.xlu0 %v573
          %v575 = vpop.xlane.xlu0 %574
          %vm576 = vcmp.eq.s32.totalorder %v446, 1
          %v577 = vsel %vm576, 1, 0
          %v578 = vperm.slane %v577, 0
          %vm579 = vcmp.eq.s32.totalorder %v578, 1
          %v580 = vsel %vm579, %v568, -1e+30
          %581 = vmax.xlane.f32.xlu0 %v580
          %v582 = vpop.xlane.xlu0 %581
          %vm583 = vcmp.eq.s32.totalorder %v446, 2
          %v584 = vsel %vm583, 1, 0
          %v585 = vperm.slane %v584, 0
          %vm586 = vcmp.eq.s32.totalorder %v585, 1
          %v587 = vsel %vm586, %v568, -1e+30
          %588 = vmax.xlane.f32.xlu0 %v587
          %v589 = vpop.xlane.xlu0 %588
          %v590 = vld [vmem:[#allocation4] sm:$0xff]
          %vm591 = vcmask 7168
          %v592 = vsel %vm591, %v575, %v582
          %vm593 = vcmask 15360
          %v594 = vsel %vm593, %v592, %v589
          %v595 = vmax.f32 %v590, %v594
          %vm596 = vcmask 23552
          %597 = vst.msk [vmem:[#allocation4] sm:$0xff] %vm596, %v595
          %v598 = vld [vmem:[#allocation7] sm:$0xff]
          %v599 = vsel %vm458, %v561, 0.0
          %600 = vadd.xlane.f32.xlu0 %v599
          %v601 = vpop.xlane.xlu0 %600
          %v602 = vadd.f32 %v598, %v601
          %603 = vst.msk [vmem:[#allocation7] sm:$0xff] %vm591, %v602
          %v604 = vld [vmem:[#allocation6] sm:$0xff]
          %605 = vmax.xlane.f32.xlu0 %v567
          %v606 = vpop.xlane.xlu0 %605
          %v607 = vmax.f32 %v604, %v606
          %v608 = vsub.f32 %v604, %v607
          %v609 = vmul.f32 %v608, 1.442695
          %v610 = vpow.pop %v609
          %612 = vset.pattern.permute.xlu0 0
          %613 = vperm.xlu0 %612, %v607
          %v614 = vpop.permute.xlu0 %613
          %v616 = vsub.f32 %v567, %v614
          %v617 = vmul.f32 %v616, 1.442695
          %v618 = vpow.pop %v617
          %619 = vmatpush.xpose.msra.mxu0 0.0
          %620 = vmatpush.xpose.msra.mxu0 0.0
          %621 = vmatpush.xpose.msra.mxu0 0.0
          %622 = vmatpush.xpose.msra.mxu0 0.0
          %623 = vmatpush.xpose.msra.mxu0 0.0
          %624 = vmatpush.xpose.msra.mxu0 0.0
          %625 = vmatpush.xpose.msra.mxu0 0.0
          %626 = vmatpush.xpose.msra.mxu0 0.0
          %627 = vmatpush.xpose.msra.mxu0 0.0
          %628 = vmatpush.xpose.msra.mxu0 0.0
          %629 = vmatpush.xpose.msra.mxu0 0.0
          %630 = vmatpush.xpose.msra.mxu0 0.0
          %631 = vmatpush.xpose.msra.mxu0 0.0
          %632 = vmatpush.xpose.msra.mxu0 0.0
          %633 = vmatpush.xpose.msra.mxu0 0.0
          %634 = vmatpush.xpose.msra.mxu0 %v465
          %635 = vmatmul.f32.gmra.mxu0 %v618
          %v636 = vpop.f32.mrf.mxu0
          %v637 = vadd.f32 0.0, %v636
          %638 = vdwg.mxu0
          %v639 = vld [vmem:[#allocation5] sm:$0xff]
          %641 = vset.pattern.permute.xlu0 0
          %642 = vperm.xlu0 %641, %v610
          %v643 = vpop.permute.xlu0 %642
          %v645 = vmul.f32 %v639, %v643
          %v646 = vadd.f32 %v645, %v637
          %647 = vst.msk [vmem:[#allocation5] sm:$0xff] %vm596, %v646
          %648 = vst.msk [vmem:[#allocation6] sm:$0xff] %vm591, %v607
        $region97: #{tpu_custom_call.1} parent=84 // pred_fallthru
          _
        %p649 = scmp.eq.s32.totalorder %s27, 1
        %p650 = pnand %p649, %p474
        %p651 = pneg %p650
        // Predicated region
        $region98: #{tpu_custom_call.1} parent=84 // pred_check
          _
        $region99: #{tpu_custom_call.1} parent=84 // pred_check_branch
          %653 = sbr.rel (%p650) target = $region101
        $region100: #{tpu_custom_call.1} parent=84 // pred_region
          %v654 = vld [vmem:[%s6] sm:$0x1]
          %vm655 = vcmp.eq.s32.totalorder %v451, %v468
          %v656 = vsel %vm655, 1, 0
          %v657 = vcvt.s32.f32 %v656
          %v658 = vld [vmem:[%s441] sm:$0xff]
          %659 = vset.pattern.permute.xlu0 0
          %660 = vperm.xlu0 %659, %v658
          %v661 = vpop.permute.xlu0 %660
          %vm662 = vcmp.eq.s32.totalorder %v451, %v661
          %v663 = vld [vmem:[#allocation4] sm:$0xff]
          %v664 = vld [vmem:[#allocation7] sm:$0xff]
          %v665 = vld [vmem:[#allocation6] sm:$0xff]
          %v666 = vld [vmem:[#allocation5] sm:$0xff]
          %vm667 = vcmask 23552
          %v668 = vsel %vm667, %v666, 0.0
          %669 = vadd.xlane.f32.xlu0 %v668
          %v670 = vpop.xlane.xlu0 %669
          %v671 = vmul.f32 %v666, %v657
          %v672 = vsel %vm667, %v671, 0.0
          %673 = vadd.xlane.f32.xlu0 %v672
          %v674 = vpop.xlane.xlu0 %673
          %v675 = vsub.f32 %v670, %v674
          %677 = vset.pattern.permute.xlu0 0
          %678 = vperm.xlu0 %677, %v664
          %v679 = vpop.permute.xlu0 %678
          %v681 = vsel %vm662, %v679, -1e+30
          %v682 = vmax.f32 %v663, %v681
          %vm683 = vcmp.lt.f32.partialorder %v654, 256.0
          %v684 = vsel %vm683, 1, 0
          %v685 = vperm.slane %v684, 0
          %vm686 = vcmp.eq.s32.totalorder %v685, 1
          %vm687 = vmor %vm686, %vm662
          %v688 = vmax.f32 %v663, -1.0
          %v689 = vsel %vm687, %v688, %v663
          %v690 = vmul.f32 %v689, 0.9
          %691 = vst.msk [vmem:[#allocation8] sm:$0xff] %vm667, %v690
          %v692 = vmul.f32 %v682, 20.0
          %v693 = vmax.f32 %v692, 0.0
          %v694 = vsel %vm686, %v693, %v692
          %696 = vset.pattern.permute.xlu0 0
          %697 = vperm.xlu0 %696, %v665
          %v698 = vpop.permute.xlu0 %697
          %v700 = vsub.f32 %v698, %v694
          %v701 = vmul.f32 %v700, 1.442695
          %v702 = vpow.pop %v701
          %v703 = vmul.f32 %v702, %v666
          %v704 = vsub.f32 256.0, %v654
          %v705 = vsub.f32 0.0, %v694
          %v706 = vmul.f32 %v705, 1.442695
          %v707 = vpow.pop %v706
          %v709 = vperm.slane %v704, 0
          %v711 = vmul.f32 %v709, %v707
          %v712 = vadd.f32 %v703, %v711
          %v713 = vlog2.pop %v712
          %v714 = vmul.f32 %v713, 0.6931472
          %v715 = vadd.f32 %v694, %v714
          %716 = vst.msk [vmem:[#allocation9] sm:$0xff] %vm667, %v715
          %v718 = vperm.slane %v654, 0
          %v720 = vmul.f32 %v657, %v718
          %v721 = vsel %vm667, %v720, 0.0
          %722 = vadd.xlane.f32.xlu0 %v721
          %v723 = vpop.xlane.xlu0 %722
          %vm724 = vcmp.gt.f32.partialorder %v657, 0.5
          %v725 = vsel %vm724, -1e+30, %v682
          %v726 = vsel %vm667, %v725, -inf
          %727 = vmax.xlane.f32.xlu0 %v726
          %v728 = vpop.xlane.xlu0 %727
          %vm729 = vcmp.gt.f32.partialorder %v723, 0.0
          %v730 = vmax.f32 %v728, -1.0
          %v731 = vsel %vm729, %v730, %v728
          %v732 = vmul.f32 %v731, 0.9
          %vm733 = vcmask 7168
          %734 = vst.msk [vmem:[#allocation10] sm:$0xff] %vm733, %v732
          %v735 = vmul.f32 %v728, 20.0
          %v736 = vmax.f32 %v735, 0.0
          %v737 = vsel %vm729, %v736, %v735
          %v738 = vsub.f32 %v665, %v737
          %v739 = vmul.f32 %v738, 1.442695
          %v740 = vpow.pop %v739
          %v741 = vmul.f32 %v740, %v675
          %v742 = vsub.f32 0.0, %v737
          %v743 = vmul.f32 %v742, 1.442695
          %v744 = vpow.pop %v743
          %v745 = vmul.f32 %v723, %v744
          %v746 = vadd.f32 %v741, %v745
          %v747 = vlog2.pop %v746
          %v748 = vmul.f32 %v747, 0.6931472
          %v749 = vadd.f32 %v737, %v748
          %750 = vst.msk [vmem:[#allocation11] sm:$0xff] %vm733, %v749
          %v751 = vmul.f32 %v715, %v657
          %v752 = vsel %vm667, %v751, 0.0
          %753 = vadd.xlane.f32.xlu0 %v752
          %v754 = vpop.xlane.xlu0 %753
          %v755 = vld [vmem:[%s441] sm:$0xff]
          %vm756 = vcmp.eq.s32.totalorder %v755, %v448
          %v757 = vmul.f32 %v664, 20.0
          %v758 = vsel %vm756, %v757, 0.0
          %v759 = vsub.f32 %v758, %v754
          %v760 = vmax.f32 %v759, -18.420681
          %v761 = vsub.f32 0.0, %v760
          %762 = vst.msk [vmem:[#allocation12] sm:$0xff] %vm733, %v761
        $region101: #{tpu_custom_call.1} parent=84 // pred_fallthru
          _
        // Predicated region
        $region102: #{tpu_custom_call.1} parent=84 // pred_check
          %p763 = pneg %p649
        $region103: #{tpu_custom_call.1} parent=84 // pred_check_branch
          %765 = sbr.rel (%p763) target = $region105
        $region104: #{tpu_custom_call.1} parent=84 // pred_region
          %s766 = smul.u32 %s28, 8
          %s767 = scalar_lea.vmem [#allocation3], %s766
          %v768 = vld [vmem:[%s767] sm:$0xff]
          %v769 = vmul.f32 %v768, 20.0
          %v770 = vld [vmem:[#allocation8] sm:$0xff]
          %vm771 = vcmask 23552
          %v773 = vsel %vm771, %v770, 0
          %vm775 = vcmask 1042432
          %v777 = vsel %vm775, %v465, 0
          %779 = vmatpush.msra.mxu0 0.0
          %780 = vmatpush.msra.mxu0 0.0
          %781 = vmatpush.msra.mxu0 0.0
          %782 = vmatpush.msra.mxu0 0.0
          %783 = vmatpush.msra.mxu0 0.0
          %784 = vmatpush.msra.mxu0 0.0
          %785 = vmatpush.msra.mxu0 0.0
          %786 = vmatpush.msra.mxu0 0.0
          %787 = vmatpush.msra.mxu0 0.0
          %788 = vmatpush.msra.mxu0 0.0
          %789 = vmatpush.msra.mxu0 0.0
          %790 = vmatpush.msra.mxu0 0.0
          %791 = vmatpush.msra.mxu0 0.0
          %792 = vmatpush.msra.mxu0 0.0
          %793 = vmatpush.msra.mxu0 0.0
          %794 = vmatpush.msra.mxu0 %v777
          %795 = vmatmul.f32.gmra.mxu0 %v773
          %v796 = vpop.f32.mrf.mxu0
          %v797 = vadd.f32 0.0, %v796
          %798 = vdwg.mxu0
          %v799 = vld [vmem:[#allocation9] sm:$0xff]
          %v801 = vsel %vm771, %v799, 0
          %803 = vmatpush.msra.mxu0 0.0
          %804 = vmatpush.msra.mxu0 0.0
          %805 = vmatpush.msra.mxu0 0.0
          %806 = vmatpush.msra.mxu0 0.0
          %807 = vmatpush.msra.mxu0 0.0
          %808 = vmatpush.msra.mxu0 0.0
          %809 = vmatpush.msra.mxu0 0.0
          %810 = vmatpush.msra.mxu0 0.0
          %811 = vmatpush.msra.mxu0 0.0
          %812 = vmatpush.msra.mxu0 0.0
          %813 = vmatpush.msra.mxu0 0.0
          %814 = vmatpush.msra.mxu0 0.0
          %815 = vmatpush.msra.mxu0 0.0
          %816 = vmatpush.msra.mxu0 0.0
          %817 = vmatpush.msra.mxu0 0.0
          %818 = vmatpush.msra.mxu0 %v777
          %819 = vmatmul.f32.gmra.mxu0 %v801
          %v820 = vpop.f32.mrf.mxu0
          %v821 = vadd.f32 0.0, %v820
          %822 = vdwg.mxu0
          %v823 = vsel %vm459, %v768, -1.0
          %vm824 = vcmp.gt.f32.partialorder %v823, %v797
          %v825 = vsel %vm824, 1, 0
          %v826 = vcvt.s32.f32 %v825
          %v827 = vsub.f32 %v769, %v821
          %v828 = vmax.f32 %v827, -18.420681
          %v829 = vld [vmem:[#allocation13] sm:$0xff]
          %830 = vmatpush.xpose.msra.mxu0 0.0
          %831 = vmatpush.xpose.msra.mxu0 0.0
          %832 = vmatpush.xpose.msra.mxu0 0.0
          %833 = vmatpush.xpose.msra.mxu0 0.0
          %834 = vmatpush.xpose.msra.mxu0 0.0
          %835 = vmatpush.xpose.msra.mxu0 0.0
          %836 = vmatpush.xpose.msra.mxu0 0.0
          %837 = vmatpush.xpose.msra.mxu0 0.0
          %838 = vmatpush.xpose.msra.mxu0 0.0
          %839 = vmatpush.xpose.msra.mxu0 0.0
          %840 = vmatpush.xpose.msra.mxu0 0.0
          %841 = vmatpush.xpose.msra.mxu0 0.0
          %842 = vmatpush.xpose.msra.mxu0 0.0
          %843 = vmatpush.xpose.msra.mxu0 0.0
          %844 = vmatpush.xpose.msra.mxu0 0.0
          %845 = vmatpush.xpose.msra.mxu0 %v465
          %846 = vmatmul.f32.gmra.mxu0 %v826
          %v847 = vpop.f32.mrf.mxu0
          %v848 = vadd.f32 0.0, %v847
          %849 = vdwg.mxu0
          %v850 = vadd.f32 %v829, %v848
          %851 = vst.msk [vmem:[#allocation13] sm:$0xff] %vm771, %v850
          %v852 = vld [vmem:[#allocation15] sm:$0xff]
          %v853 = vmul.f32 %v768, %v826
          %854 = vmatpush.xpose.msra.mxu0 0.0
          %855 = vmatpush.xpose.msra.mxu0 0.0
          %856 = vmatpush.xpose.msra.mxu0 0.0
          %857 = vmatpush.xpose.msra.mxu0 0.0
          %858 = vmatpush.xpose.msra.mxu0 0.0
          %859 = vmatpush.xpose.msra.mxu0 0.0
          %860 = vmatpush.xpose.msra.mxu0 0.0
          %861 = vmatpush.xpose.msra.mxu0 0.0
          %862 = vmatpush.xpose.msra.mxu0 0.0
          %863 = vmatpush.xpose.msra.mxu0 0.0
          %864 = vmatpush.xpose.msra.mxu0 0.0
          %865 = vmatpush.xpose.msra.mxu0 0.0
          %866 = vmatpush.xpose.msra.mxu0 0.0
          %867 = vmatpush.xpose.msra.mxu0 0.0
          %868 = vmatpush.xpose.msra.mxu0 0.0
          %869 = vmatpush.xpose.msra.mxu0 %v465
          %870 = vmatmul.f32.gmra.mxu0 %v853
          %v871 = vpop.f32.mrf.mxu0
          %v872 = vadd.f32 0.0, %v871
          %873 = vdwg.mxu0
          %v874 = vadd.f32 %v852, %v872
          %875 = vst.msk [vmem:[#allocation15] sm:$0xff] %vm771, %v874
          %v876 = vld [vmem:[#allocation14] sm:$0xff]
          %v877 = vmul.f32 %v828, %v826
          %878 = vmatpush.xpose.msra.mxu0 0.0
          %879 = vmatpush.xpose.msra.mxu0 0.0
          %880 = vmatpush.xpose.msra.mxu0 0.0
          %881 = vmatpush.xpose.msra.mxu0 0.0
          %882 = vmatpush.xpose.msra.mxu0 0.0
          %883 = vmatpush.xpose.msra.mxu0 0.0
          %884 = vmatpush.xpose.msra.mxu0 0.0
          %885 = vmatpush.xpose.msra.mxu0 0.0
          %886 = vmatpush.xpose.msra.mxu0 0.0
          %887 = vmatpush.xpose.msra.mxu0 0.0
          %888 = vmatpush.xpose.msra.mxu0 0.0
          %889 = vmatpush.xpose.msra.mxu0 0.0
          %890 = vmatpush.xpose.msra.mxu0 0.0
          %891 = vmatpush.xpose.msra.mxu0 0.0
          %892 = vmatpush.xpose.msra.mxu0 0.0
          %893 = vmatpush.xpose.msra.mxu0 %v465
          %894 = vmatmul.f32.gmra.mxu0 %v877
          %v895 = vpop.f32.mrf.mxu0
          %v896 = vadd.f32 0.0, %v895
          %897 = vdwg.mxu0
          %v898 = vadd.f32 %v876, %v896
          %899 = vst.msk [vmem:[#allocation14] sm:$0xff] %vm771, %v898
          %v900 = vsel %vm472, 1, 0
          %v901 = vcvt.s32.f32 %v900
          %v902 = vsel %vm472, %v768, -1.0
          %v903 = vld [vmem:[#allocation10] sm:$0xff]
          %905 = vset.pattern.permute.xlu0 0
          %906 = vperm.xlu0 %905, %v903
          %v907 = vpop.permute.xlu0 %906
          %vm909 = vcmp.gt.f32.partialorder %v902, %v907
          %v910 = vsel %vm909, 1, 0
          %v911 = vcvt.s32.f32 %v910
          %v912 = vmul.f32 %v769, %v901
          %v913 = vld [vmem:[#allocation11] sm:$0xff]
          %915 = vset.pattern.permute.xlu0 0
          %916 = vperm.xlu0 %915, %v913
          %v917 = vpop.permute.xlu0 %916
          %v919 = vsub.f32 %v912, %v917
          %v920 = vmax.f32 %v919, -18.420681
          %v921 = vld [vmem:[#allocation16] sm:$0xff]
          %922 = vadd.xlane.f32.xlu0 %v911
          %v923 = vpop.xlane.xlu0 %922
          %v924 = vadd.f32 %v921, %v923
          %vm925 = vcmask 7168
          %926 = vst.msk [vmem:[#allocation16] sm:$0xff] %vm925, %v924
          %v927 = vld [vmem:[#allocation17] sm:$0xff]
          %v928 = vmul.f32 %v920, %v911
          %929 = vadd.xlane.f32.xlu0 %v928
          %v930 = vpop.xlane.xlu0 %929
          %v931 = vadd.f32 %v927, %v930
          %932 = vst.msk [vmem:[#allocation17] sm:$0xff] %vm925, %v931
        $region105: #{tpu_custom_call.1} parent=84 // pred_fallthru
          _
        %p933 = scmp.eq.s32.totalorder %s28, 1
        %p934 = pnand %p649, %p933
        %p935 = pneg %p934
        // Predicated region
        $region106: #{tpu_custom_call.1} parent=84 // pred_check
          _
        $region107: #{tpu_custom_call.1} parent=84 // pred_check_branch
          %937 = sbr.rel (%p934) target = $region109
        $region108: #{tpu_custom_call.1} parent=84 // pred_region
          %vm938 = vcmp.eq.s32.totalorder %v451, %v468
          %v939 = vsel %vm938, 1, 0
          %v940 = vcvt.s32.f32 %v939
          %v941 = vld [vmem:[#allocation13] sm:$0xff]
          %v942 = vadd.f32 %v941, 1.0
          %v943 = vld [vmem:[#allocation14] sm:$0xff]
          %v944 = vsub.f32 0.0, %v943
          %v945 = vrcp.pop %v942
          %v946 = vmul.f32 %v942, %v945
          %v947 = vsub.f32 1.0, %v946
          %v948 = vmul.f32 %v945, %v947
          %v949 = vadd.f32 %v945, %v948
          %vm950 = vweird.f32 %v942
          %vm951 = vweird.f32 %v945
          %vm952 = vmor %vm950, %vm951
          %v953 = vsel %vm952, %v945, %v949
          %v954 = vand.u32 2147483647, %v942
          %vm955 = vcmp.eq.f32.partialorder %v954, 8.507059e+37
          %v956 = vand.u32 %v942, 2147483648
          %v957 = vor.u32 1.1754944e-38, %v956
          %v958 = vsel %vm955, %v957, %v953
          %v959 = vmul.f32 %v944, %v958
          %v960 = vmul.f32 %v959, %v940
          %vm961 = vcmask 23552
          %v962 = vsel %vm961, %v960, 0.0
          %963 = vadd.xlane.f32.xlu0 %v962
          %v964 = vpop.xlane.xlu0 %963
          %v965 = vld [vmem:[#allocation15] sm:$0xff]
          %v966 = vmul.f32 %v965, %v958
          %vm967 = vcmp.gt.f32.partialorder %v966, 0.6
          %v968 = vsel %vm967, 1, 0
          %v969 = vcvt.s32.f32 %v968
          %v970 = vmul.f32 %v959, %v969
          %v971 = vld [vmem:[#allocation17] sm:$0xff]
          %v972 = vsub.f32 0.0, %v971
          %v973 = vld [vmem:[#allocation16] sm:$0xff]
          %v974 = vadd.f32 %v973, 1.0
          %v975 = vrcp.pop %v974
          %v976 = vmul.f32 %v974, %v975
          %v977 = vsub.f32 1.0, %v976
          %v978 = vmul.f32 %v975, %v977
          %v979 = vadd.f32 %v975, %v978
          %vm980 = vweird.f32 %v974
          %vm981 = vweird.f32 %v975
          %vm982 = vmor %vm980, %vm981
          %v983 = vsel %vm982, %v975, %v979
          %v984 = vand.u32 2147483647, %v974
          %vm985 = vcmp.eq.f32.partialorder %v984, 8.507059e+37
          %v986 = vand.u32 %v974, 2147483648
          %v987 = vor.u32 1.1754944e-38, %v986
          %v988 = vsel %vm985, %v987, %v983
          %v989 = vmul.f32 %v972, %v988
          %v990 = vld [vmem:[#allocation12] sm:$0xff]
          %992 = vrot.lane.b32.xlu0 %v989, 2
          %v993 = vpop.permute.xlu0 %992
          %996 = vrot.lane.b32.xlu0 %v970, 3
          %v997 = vpop.permute.xlu0 %996
          %vm999 = vcmask 7168
          %v1000 = vsel %vm999, %v990, %v964
          %vm1001 = vcmask 15360
          %v1002 = vsel %vm1001, %v1000, %v993
          %v1003 = vsel %vm961, %v1002, %v997
          %vm1004 = vcmask 48128
          %v1005 = vsel %vm1004, %v1003, 0.0
          %1006 = vst [vmem:[%s422] sm:$0xff] %v1005
        $region109: #{tpu_custom_call.1} parent=84 // pred_fallthru
          _
        %s1007 = sand.u32 %s231, 1
        %s1008 = scalar_lea.sflag [#allocation20], %s1007
        %s1009 = sand.u32 %s231, 1
        %s1010 = smul.addr %s1009, 8
        %s1011 = scalar_lea.vmem [#allocation19], %s1010
        // Predicated region
        $region110: #{tpu_custom_call.1} parent=84 // pred_check
          %p1012 = pneg %p241
        $region111: #{tpu_custom_call.1} parent=84 // pred_check_branch
          %1014 = sbr.rel (%p1012) target = $region113
        $region112: #{tpu_custom_call.1} parent=84 // pred_region
          %1016 = vsyncadd %s1008, 0
          %s1017 = smul.addr %s26, 8
          %s1018 = scalar_lea.hbm %s7, %s1017
          %s1020 = sshll.u32 %s1011, 4
          %s1021 = int_to_ptr.vmem [resolvable:$true] %s1020
          %s1022 = sshll.u32 %s1018, 4
          %s1023 = int_to_ptr.hbm [resolvable:$true] %s1022
          %1025 = dma.vmem_to_hbm [thread:$0]  %s1021, 128, %s1023, %s1008
        $region113: #{tpu_custom_call.1} parent=84 // pred_fallthru
          _
      $region85: #{tpu_custom_call.1} parent=5 // pred_fallthru
        _
      %p1026 = scmp.le.s32.totalorder 2, %s16
      // Predicated region
      $region114: #{tpu_custom_call.1} parent=5 // pred_check
        %p1027 = pneg %p1026
      $region115: #{tpu_custom_call.1} parent=5 // pred_check_branch
        %1029 = sbr.rel (%p1027) target = $region117
      $region116: #{tpu_custom_call.1} parent=5 // pred_region
        %s1030 = ssub.s32 %s16, 2
        // Predicated region
        $region118: #{tpu_custom_call.1} parent=116 // pred_check
          %p1031 = pneg %p247
        $region119: #{tpu_custom_call.1} parent=116 // pred_check_branch
          %1033 = sbr.rel (%p1031) target = $region121
        $region120: #{tpu_custom_call.1} parent=116 // pred_region
          %s1034 = sand.u32 %s232, 1
          %s1035 = scalar_lea.sflag [#allocation20], %s1034
          %s1036 = sand.u32 %s232, 1
          %s1037 = smul.addr %s1036, 8
          %s1038 = scalar_lea.vmem [#allocation19], %s1037
          %1040 = dma.done %s1035, 128
        $region121: #{tpu_custom_call.1} parent=116 // pred_fallthru
          _
      $region117: #{tpu_custom_call.1} parent=5 // pred_fallthru
        _
    $region6: #{tpu_custom_call.1} parent=1 // loop_footer
      %s20 = sadd.s32 1, %s16
    $region7: #{tpu_custom_call.1} parent=1 // loop_footer_branch
      %15 = sbr.rel target = $region3
    $region8: #{tpu_custom_call.1} parent=1 // loop_exit
      _
    %1041 = vsyncpa [#allocation20], 1
    %s1042 = scalar_lea.sflag [#allocation20], 1
    %1043 = vsyncpa %s1042, 1

</llo_original>
